<compile_context>
chip_gen: v7x
topology: tpu7x:2x2x1
jax: 0.10.0
libtpu: 0.0.40
codegen_flags: <defaults>
</compile_context>

<pallas_src>
import jax
import jax.numpy as jnp
from jax import lax
from jax.experimental import pallas as pl
from jax.experimental.pallas import tpu as pltpu


# --------------------------------------------------------------------------- helpers
def _upsample_matrix(n_in: int) -> jnp.ndarray:
    """(2*n_in, n_in) matrix reproducing nn.Upsample(scale_factor=2, mode='bilinear',
    align_corners=False) along one axis."""
    n_out = 2 * n_in
    i = jnp.arange(n_out, dtype=jnp.float32)
    src = jnp.maximum((i + 0.5) / 2.0 - 0.5, 0.0)       # PyTorch clamps negative src to 0
    i0 = jnp.floor(src).astype(jnp.int32)
    lam = src - i0.astype(jnp.float32)
    i1 = jnp.minimum(i0 + 1, n_in - 1)
    rows = jnp.arange(n_out)
    u = jnp.zeros((n_out, n_in), jnp.float32)
    u = u.at[rows, i0].add(1.0 - lam)
    u = u.at[rows, i1].add(lam)
    return u


def _band_weights(w, w_in: int) -> jnp.ndarray:
    """w: (Cout, Cin, 3, 3) OIHW -> (3, w_in*Cin, (w_in-2)*Cout) banded matrices.

    band[dh][(w, ci), (wo, co)] = w[co, ci, dh, w - wo] if 0 <= w - wo <= 2 else 0,
    so  rows(dh) @ band[dh]  performs the dw-tap + Cin contraction of a valid 3x3 conv on
    an NHWC slab whose lane axis is the flattened (w, ci) pair.
    """
    c_out, c_in = w.shape[0], w.shape[1]
    w_out = w_in - 2
    taps = jnp.transpose(w, (2, 3, 1, 0)).astype(jnp.float32)    # (3, 3, Cin, Cout)
    eye_w = jnp.eye(w_in, dtype=jnp.float32)
    bands = []
    for dh in range(3):
        m = jnp.zeros((w_in * c_in, w_out * c_out), jnp.float32)
        for dw in range(3):
            shift = eye_w[:, dw:dw + w_out]                      # [w, wo] = 1 iff w == wo + dw
            m = m + jnp.kron(shift, taps[dh, dw])
        bands.append(m)
    return jnp.stack(bands)


def _channel_gather(w_out: int, c_out: int) -> jnp.ndarray:
    """G: (w_out*c_out, c_out) with G[(wo, c), c'] = 1[c == c'].
    row @ G sums the wo replicas of each channel; row_c @ G.T broadcasts them back."""
    return jnp.kron(jnp.ones((w_out, 1), jnp.float32), jnp.eye(c_out, dtype=jnp.float32))


# --------------------------------------------------------------------------- fused kernel
def up_forward(x1, x2, params):
    """Up.forward(x1, x2) with bilinear=True, padding=0, as one fused Pallas TPU kernel."""
    N, Cin, H1, W1 = x1.shape
    N2, Cin2, H2, W2 = x2.shape
    assert N2 == N and Cin2 == Cin
    Cout = params["w1"].shape[0]
    H1u, W1u = 2 * H1, 2 * W1
    dY, dX = H2 - H1u, W2 - W1u
    assert dY >= 0 and dX >= 0, "skip connection must be at least as large as the upsampled map"
    Ho1, Wo1 = H2 - 2, W2 - 2
    Ho2, Wo2 = Ho1 - 2, Wo1 - 2

    # interpolation matrices; zero rows/cols encode F.pad (top/left = d//2)
    uh = jnp.zeros((H2, H1), jnp.float32).at[dY // 2: dY // 2 + H1u, :].set(_upsample_matrix(H1))
    uw = jnp.zeros((W2, W1), jnp.float32).at[dX // 2: dX // 2 + W1u, :].set(_upsample_matrix(W1))
    UH = jnp.kron(jnp.eye(N, dtype=jnp.float32), uh)             # (N*H2, N*H1)  block-diag over n
    UWCT = jnp.kron(uw, jnp.eye(Cin, dtype=jnp.float32)).T       # (W1*Cin, W2*Cin) keeps c minor

    # conv weights as per-dh banded matrices; BN params packed as (bias, gamma, beta)
    B1 = _band_weights(params["w1"], W2)                         # (3, W2*Cin,   Wo1*Cout)
    B2 = _band_weights(params["w2"], Wo1)                        # (3, Wo1*Cout, Wo2*Cout)
    G1 = _channel_gather(Wo1, Cout)
    G2 = _channel_gather(Wo2, Cout)
    bn1 = jnp.stack([params["b1"], params["g1"], params["beta1"]]).astype(jnp.float32)
    bn2 = jnp.stack([params["b2"], params["g2"], params["beta2"]]).astype(jnp.float32)

    # NCHW -> NHWC-flattened 2-D slabs at the module boundary only (layout plumbing).
    x1f = jnp.transpose(x1, (0, 2, 3, 1)).reshape(N * H1, W1 * Cin)
    x2f = jnp.transpose(x2, (0, 2, 3, 1)).reshape(N * H2, W2 * Cin)

    def kernel(x1_ref, x2_ref, uh_ref, uwct_ref, w1b_ref, w2b_ref,
               g1_ref, g1t_ref, g2_ref, g2t_ref, bn1_ref, bn2_ref, o_ref):
        f32 = jnp.float32

        # ---- stage 1: bilinear 2x upsample + zero-pad + skip add, all (n, c) at once ----
        t = jnp.dot(x1_ref[...], uwct_ref[...], preferred_element_type=f32)    # (N*H1, W2*Cin)
        x = jnp.dot(uh_ref[...], t, preferred_element_type=f32) + x2_ref[...]  # (N*H2, W2*Cin)

        # ---- conv3x3(valid) + BatchNorm(train-mode batch stats) + ReLU, NHWC-flat ----
        def conv_bn_relu(v, h_in, wb_ref, g_ref, gt_ref, bn_ref, ho, wo):
            p = N * ho * wo
            acc = None
            for dh in range(3):
                # shifted row-window of the VMEM-resident slab (no HBM im2col)
                rows = jnp.concatenate(
                    [v[n * h_in + dh: n * h_in + dh + ho, :] for n in range(N)], axis=0)
                part = jnp.dot(rows, wb_ref[dh], preferred_element_type=f32)   # (N*ho, wo*Cout)
                acc = part if acc is None else acc + part
            bn = bn_ref[...]                                                   # (3, Cout)
            acc = acc + jnp.dot(bn[0:1, :], gt_ref[...], preferred_element_type=f32)  # conv bias
            # one-pass biased batch stats; channel reduce / broadcast rides the MXU via G
            csum = jnp.dot(jnp.sum(acc, axis=0, keepdims=True), g_ref[...],
                           preferred_element_type=f32)                         # (1, Cout)
            csq = jnp.dot(jnp.sum(acc * acc, axis=0, keepdims=True), g_ref[...],
                          preferred_element_type=f32)                          # (1, Cout)
            mean = csum * (1.0 / p)
            var = jnp.maximum(csq * (1.0 / p) - mean * mean, 0.0)              # clamp >= 0
            scale = bn[1:2, :] * lax.rsqrt(var + 1e-5)
            shift = bn[2:3, :] - mean * scale
            y = acc * jnp.dot(scale, gt_ref[...], preferred_element_type=f32) \
                + jnp.dot(shift, gt_ref[...], preferred_element_type=f32)
            return jnp.maximum(y, 0.0)                                         # (N*ho, wo*Cout)

        y1 = conv_bn_relu(x, H2, w1b_ref, g1_ref, g1t_ref, bn1_ref, Ho1, Wo1)
        y2 = conv_bn_relu(y1, Ho1, w2b_ref, g2_ref, g2t_ref, bn2_ref, Ho2, Wo2)
        o_ref[...] = y2        # (N*Ho2, Wo2*Cout): lane-dense output slab (last dim = 128 here)

    vmem = pl.BlockSpec(memory_space=pltpu.MemorySpace.VMEM)
    out = pl.pallas_call(
        kernel,
        in_specs=[vmem] * 12,
        out_specs=vmem,
        out_shape=jax.ShapeDtypeStruct((N * Ho2, Wo2 * Cout), jnp.float32),
    )(x1f, x2f, UH, UWCT, B1, B2, G1, G1.T, G2, G2.T, bn1, bn2)

    # lane-dense NHWC slab -> NCHW at the module boundary.
    return jnp.transpose(out.reshape(N, Ho2, Wo2, Cout), (0, 3, 1, 2))


# --------------------------------------------------------------------------- pure-JAX reference
def up_reference(x1, x2, params):
    N, C, H1, W1 = x1.shape
    _, _, H2, W2 = x2.shape
    uh = _upsample_matrix(H1)
    uw = _upsample_matrix(W1)
    up = jnp.einsum("Hh,nchw,Ww->ncHW", uh, x1, uw)
    dY, dX = H2 - 2 * H1, W2 - 2 * W1
    up = jnp.pad(up, ((0, 0), (0, 0), (dY // 2, dY - dY // 2), (dX // 2, dX - dX // 2)))
    x = up + x2

    def dc(x, w, b, g, beta):
        y = lax.conv_general_dilated(x, w, (1, 1), "VALID",
                                     dimension_numbers=("NCHW", "OIHW", "NCHW"))
        y = y + b[None, :, None, None]
        mean = y.mean(axis=(0, 2, 3), keepdims=True)
        var = jnp.square(y - mean).mean(axis=(0, 2, 3), keepdims=True)
        y = (y - mean) * lax.rsqrt(var + 1e-5)
        y = y * g[None, :, None, None] + beta[None, :, None, None]
        return jnp.maximum(y, 0.0)

    y = dc(x, params["w1"], params["b1"], params["g1"], params["beta1"])
    y = dc(y, params["w2"], params["b2"], params["g2"], params["beta2"])
    return y


# --------------------------------------------------------------------------- main
if __name__ == "__main__":
    in_ch, out_ch = 4, 8
    N = 2
    H1 = W1 = 8      # x1 spatial (decoder feature); upsampled -> 16x16
    H2 = W2 = 20     # x2 spatial (skip connection); F.pad adds 2 on each side

    key = jax.random.PRNGKey(0)
    ks = jax.random.split(key, 6)
    x1 = jax.random.normal(ks[0], (N, in_ch, H1, W1), jnp.float32)
    x2 = jax.random.normal(ks[1], (N, in_ch, H2, W2), jnp.float32)

    params = dict(
        # DoubleConv(in_ch, out_ch): conv1 (out_ch, in_ch, 3, 3), conv2 (out_ch, out_ch, 3, 3)
        w1=0.1 * jax.random.normal(ks[2], (out_ch, in_ch, 3, 3), jnp.float32),
        b1=0.1 * jax.random.normal(ks[3], (out_ch,), jnp.float32),
        g1=jnp.ones((out_ch,), jnp.float32),      # BatchNorm default init: gamma=1
        beta1=jnp.zeros((out_ch,), jnp.float32),  # BatchNorm default init: beta=0
        w2=0.1 * jax.random.normal(ks[4], (out_ch, out_ch, 3, 3), jnp.float32),
        b2=0.1 * jax.random.normal(ks[5], (out_ch,), jnp.float32),
        g2=jnp.ones((out_ch,), jnp.float32),
        beta2=jnp.zeros((out_ch,), jnp.float32),
    )

    out = jax.block_until_ready(up_forward(x1, x2, params))
    ref = jax.block_until_ready(up_reference(x1, x2, params))

    assert out.shape == (N, out_ch, H2 - 4, W2 - 4), out.shape
    err = float(jnp.max(jnp.abs(out - ref)))
    assert jnp.allclose(out, ref, rtol=2e-3, atol=2e-3), err
    print("KERNEL_OK")
</pallas_src>

<mosaic_0001>
module attributes {stable_mosaic.version = 11 : i64} {
  func.func @kernel(%arg0: memref<16x32xf32, #tpu.memory_space<vmem>>, %arg1: memref<40x80xf32, #tpu.memory_space<vmem>>, %arg2: memref<40x16xf32, #tpu.memory_space<vmem>>, %arg3: memref<32x80xf32, #tpu.memory_space<vmem>>, %arg4: memref<3x80x144xf32, #tpu.memory_space<vmem>>, %arg5: memref<3x144x128xf32, #tpu.memory_space<vmem>>, %arg6: memref<144x8xf32, #tpu.memory_space<vmem>>, %arg7: memref<8x144xf32, #tpu.memory_space<vmem>>, %arg8: memref<128x8xf32, #tpu.memory_space<vmem>>, %arg9: memref<8x128xf32, #tpu.memory_space<vmem>>, %arg10: memref<3x8xf32, #tpu.memory_space<vmem>>, %arg11: memref<3x8xf32, #tpu.memory_space<vmem>>, %arg12: memref<32x128xf32, #tpu.memory_space<vmem>>) attributes {dimension_semantics = [], scalar_prefetch = 0 : i64, scratch_operands = 0 : i64, tpu.core_type = #tpu.core_type<tc>} {
    %c0 = arith.constant 0 : index
    %c0_0 = arith.constant 0 : index
    %0 = vector.load %arg0[%c0, %c0_0] : memref<16x32xf32, #tpu.memory_space<vmem>>, vector<16x32xf32>
    %c0_1 = arith.constant 0 : index
    %c0_2 = arith.constant 0 : index
    %1 = vector.load %arg3[%c0_1, %c0_2] : memref<32x80xf32, #tpu.memory_space<vmem>>, vector<32x80xf32>
    %cst = arith.constant dense<0.000000e+00> : vector<16x80xf32>
    %2 = tpu.matmul %0, %1, %cst {dimension_numbers = #tpu.dot_dimension_numbers<[1], [0], [0], [1], [0, 0, 1, 1], [], []>} : vector<16x32xf32>, vector<32x80xf32>, vector<16x80xf32> -> vector<16x80xf32>
    %c0_3 = arith.constant 0 : index
    %c0_4 = arith.constant 0 : index
    %3 = vector.load %arg2[%c0_3, %c0_4] : memref<40x16xf32, #tpu.memory_space<vmem>>, vector<40x16xf32>
    %cst_5 = arith.constant dense<0.000000e+00> : vector<40x80xf32>
    %4 = tpu.matmul %3, %2, %cst_5 {dimension_numbers = #tpu.dot_dimension_numbers<[1], [0], [0], [1], [0, 0, 1, 1], [], []>} : vector<40x16xf32>, vector<16x80xf32>, vector<40x80xf32> -> vector<40x80xf32>
    %c0_6 = arith.constant 0 : index
    %c0_7 = arith.constant 0 : index
    %5 = vector.load %arg1[%c0_6, %c0_7] : memref<40x80xf32, #tpu.memory_space<vmem>>, vector<40x80xf32>
    %6 = arith.addf %4, %5 : vector<40x80xf32>
    %7 = vector.extract_strided_slice %6 {offsets = [0, 0], sizes = [18, 80], strides = [1, 1]} : vector<40x80xf32> to vector<18x80xf32>
    %8 = vector.extract_strided_slice %6 {offsets = [20, 0], sizes = [18, 80], strides = [1, 1]} : vector<40x80xf32> to vector<18x80xf32>
    %9 = tpu.concatenate %7, %8 in 0 : vector<18x80xf32>, vector<18x80xf32> -> vector<36x80xf32>
    %c0_8 = arith.constant 0 : index
    %c0_9 = arith.constant 0 : index
    %c0_10 = arith.constant 0 : index
    %10 = vector.load %arg4[%c0_8, %c0_9, %c0_10] : memref<3x80x144xf32, #tpu.memory_space<vmem>>, vector<1x80x144xf32>
    %11 = vector.shape_cast %10 : vector<1x80x144xf32> to vector<80x144xf32>
    %cst_11 = arith.constant dense<0.000000e+00> : vector<36x144xf32>
    %12 = tpu.matmul %9, %11, %cst_11 {dimension_numbers = #tpu.dot_dimension_numbers<[1], [0], [0], [1], [0, 0, 1, 1], [], []>} : vector<36x80xf32>, vector<80x144xf32>, vector<36x144xf32> -> vector<36x144xf32>
    %13 = vector.extract_strided_slice %6 {offsets = [1, 0], sizes = [18, 80], strides = [1, 1]} : vector<40x80xf32> to vector<18x80xf32>
    %14 = vector.extract_strided_slice %6 {offsets = [21, 0], sizes = [18, 80], strides = [1, 1]} : vector<40x80xf32> to vector<18x80xf32>
    %15 = tpu.concatenate %13, %14 in 0 : vector<18x80xf32>, vector<18x80xf32> -> vector<36x80xf32>
    %c1 = arith.constant 1 : index
    %c0_12 = arith.constant 0 : index
    %c0_13 = arith.constant 0 : index
    %16 = vector.load %arg4[%c1, %c0_12, %c0_13] : memref<3x80x144xf32, #tpu.memory_space<vmem>>, vector<1x80x144xf32>
    %17 = vector.shape_cast %16 : vector<1x80x144xf32> to vector<80x144xf32>
    %cst_14 = arith.constant dense<0.000000e+00> : vector<36x144xf32>
    %18 = tpu.matmul %15, %17, %cst_14 {dimension_numbers = #tpu.dot_dimension_numbers<[1], [0], [0], [1], [0, 0, 1, 1], [], []>} : vector<36x80xf32>, vector<80x144xf32>, vector<36x144xf32> -> vector<36x144xf32>
    %19 = arith.addf %12, %18 : vector<36x144xf32>
    %20 = vector.extract_strided_slice %6 {offsets = [2, 0], sizes = [18, 80], strides = [1, 1]} : vector<40x80xf32> to vector<18x80xf32>
    %21 = vector.extract_strided_slice %6 {offsets = [22, 0], sizes = [18, 80], strides = [1, 1]} : vector<40x80xf32> to vector<18x80xf32>
    %22 = tpu.concatenate %20, %21 in 0 : vector<18x80xf32>, vector<18x80xf32> -> vector<36x80xf32>
    %c2 = arith.constant 2 : index
    %c0_15 = arith.constant 0 : index
    %c0_16 = arith.constant 0 : index
    %23 = vector.load %arg4[%c2, %c0_15, %c0_16] : memref<3x80x144xf32, #tpu.memory_space<vmem>>, vector<1x80x144xf32>
    %24 = vector.shape_cast %23 : vector<1x80x144xf32> to vector<80x144xf32>
    %cst_17 = arith.constant dense<0.000000e+00> : vector<36x144xf32>
    %25 = tpu.matmul %22, %24, %cst_17 {dimension_numbers = #tpu.dot_dimension_numbers<[1], [0], [0], [1], [0, 0, 1, 1], [], []>} : vector<36x80xf32>, vector<80x144xf32>, vector<36x144xf32> -> vector<36x144xf32>
    %26 = arith.addf %19, %25 : vector<36x144xf32>
    %c0_18 = arith.constant 0 : index
    %c0_19 = arith.constant 0 : index
    %27 = vector.load %arg10[%c0_18, %c0_19] : memref<3x8xf32, #tpu.memory_space<vmem>>, vector<3x8xf32>
    %28 = vector.extract_strided_slice %27 {offsets = [0, 0], sizes = [1, 8], strides = [1, 1]} : vector<3x8xf32> to vector<1x8xf32>
    %c0_20 = arith.constant 0 : index
    %c0_21 = arith.constant 0 : index
    %29 = vector.load %arg7[%c0_20, %c0_21] : memref<8x144xf32, #tpu.memory_space<vmem>>, vector<8x144xf32>
    %cst_22 = arith.constant dense<0.000000e+00> : vector<1x144xf32>
    %30 = tpu.matmul %28, %29, %cst_22 {dimension_numbers = #tpu.dot_dimension_numbers<[1], [0], [0], [1], [0, 0, 1, 1], [], []>} : vector<1x8xf32>, vector<8x144xf32>, vector<1x144xf32> -> vector<1x144xf32>
    %31 = vector.broadcast %30 : vector<1x144xf32> to vector<36x144xf32>
    %32 = arith.addf %26, %31 : vector<36x144xf32>
    %cst_23 = arith.constant dense<0.000000e+00> : vector<144xf32>
    %33 = vector.multi_reduction <add>, %32, %cst_23 [0] : vector<36x144xf32> to vector<144xf32>
    %34 = vector.shape_cast %33 : vector<144xf32> to vector<1x144xf32>
    %c0_24 = arith.constant 0 : index
    %c0_25 = arith.constant 0 : index
    %35 = vector.load %arg6[%c0_24, %c0_25] : memref<144x8xf32, #tpu.memory_space<vmem>>, vector<144x8xf32>
    %cst_26 = arith.constant dense<0.000000e+00> : vector<1x8xf32>
    %36 = tpu.matmul %34, %35, %cst_26 {dimension_numbers = #tpu.dot_dimension_numbers<[1], [0], [0], [1], [0, 0, 1, 1], [], []>} : vector<1x144xf32>, vector<144x8xf32>, vector<1x8xf32> -> vector<1x8xf32>
    %37 = arith.mulf %32, %32 : vector<36x144xf32>
    %cst_27 = arith.constant dense<0.000000e+00> : vector<144xf32>
    %38 = vector.multi_reduction <add>, %37, %cst_27 [0] : vector<36x144xf32> to vector<144xf32>
    %39 = vector.shape_cast %38 : vector<144xf32> to vector<1x144xf32>
    %c0_28 = arith.constant 0 : index
    %c0_29 = arith.constant 0 : index
    %40 = vector.load %arg6[%c0_28, %c0_29] : memref<144x8xf32, #tpu.memory_space<vmem>>, vector<144x8xf32>
    %cst_30 = arith.constant dense<0.000000e+00> : vector<1x8xf32>
    %41 = tpu.matmul %39, %40, %cst_30 {dimension_numbers = #tpu.dot_dimension_numbers<[1], [0], [0], [1], [0, 0, 1, 1], [], []>} : vector<1x144xf32>, vector<144x8xf32>, vector<1x8xf32> -> vector<1x8xf32>
    %cst_31 = arith.constant 0.00154320989 : f32
    %42 = vector.broadcast %cst_31 : f32 to vector<1x8xf32>
    %43 = arith.mulf %36, %42 : vector<1x8xf32>
    %cst_32 = arith.constant 0.00154320989 : f32
    %44 = vector.broadcast %cst_32 : f32 to vector<1x8xf32>
    %45 = arith.mulf %41, %44 : vector<1x8xf32>
    %46 = arith.mulf %43, %43 : vector<1x8xf32>
    %47 = arith.subf %45, %46 : vector<1x8xf32>
    %cst_33 = arith.constant 0.000000e+00 : f32
    %48 = vector.broadcast %cst_33 : f32 to vector<1x8xf32>
    %49 = arith.maximumf %47, %48 : vector<1x8xf32>
    %50 = vector.extract_strided_slice %27 {offsets = [1, 0], sizes = [1, 8], strides = [1, 1]} : vector<3x8xf32> to vector<1x8xf32>
    %cst_34 = arith.constant 9.99999974E-6 : f32
    %51 = vector.broadcast %cst_34 : f32 to vector<1x8xf32>
    %52 = arith.addf %49, %51 : vector<1x8xf32>
    %53 = math.rsqrt %52 : vector<1x8xf32>
    %54 = arith.mulf %50, %53 : vector<1x8xf32>
    %55 = vector.extract_strided_slice %27 {offsets = [2, 0], sizes = [1, 8], strides = [1, 1]} : vector<3x8xf32> to vector<1x8xf32>
    %56 = arith.mulf %43, %54 : vector<1x8xf32>
    %57 = arith.subf %55, %56 : vector<1x8xf32>
    %c0_35 = arith.constant 0 : index
    %c0_36 = arith.constant 0 : index
    %58 = vector.load %arg7[%c0_35, %c0_36] : memref<8x144xf32, #tpu.memory_space<vmem>>, vector<8x144xf32>
    %cst_37 = arith.constant dense<0.000000e+00> : vector<1x144xf32>
    %59 = tpu.matmul %54, %58, %cst_37 {dimension_numbers = #tpu.dot_dimension_numbers<[1], [0], [0], [1], [0, 0, 1, 1], [], []>} : vector<1x8xf32>, vector<8x144xf32>, vector<1x144xf32> -> vector<1x144xf32>
    %60 = vector.broadcast %59 : vector<1x144xf32> to vector<36x144xf32>
    %61 = arith.mulf %32, %60 : vector<36x144xf32>
    %c0_38 = arith.constant 0 : index
    %c0_39 = arith.constant 0 : index
    %62 = vector.load %arg7[%c0_38, %c0_39] : memref<8x144xf32, #tpu.memory_space<vmem>>, vector<8x144xf32>
    %cst_40 = arith.constant dense<0.000000e+00> : vector<1x144xf32>
    %63 = tpu.matmul %57, %62, %cst_40 {dimension_numbers = #tpu.dot_dimension_numbers<[1], [0], [0], [1], [0, 0, 1, 1], [], []>} : vector<1x8xf32>, vector<8x144xf32>, vector<1x144xf32> -> vector<1x144xf32>
    %64 = vector.broadcast %63 : vector<1x144xf32> to vector<36x144xf32>
    %65 = arith.addf %61, %64 : vector<36x144xf32>
    %cst_41 = arith.constant 0.000000e+00 : f32
    %66 = vector.broadcast %cst_41 : f32 to vector<36x144xf32>
    %67 = arith.maximumf %65, %66 : vector<36x144xf32>
    %68 = vector.extract_strided_slice %67 {offsets = [0, 0], sizes = [16, 144], strides = [1, 1]} : vector<36x144xf32> to vector<16x144xf32>
    %69 = vector.extract_strided_slice %67 {offsets = [18, 0], sizes = [16, 144], strides = [1, 1]} : vector<36x144xf32> to vector<16x144xf32>
    %70 = tpu.concatenate %68, %69 in 0 : vector<16x144xf32>, vector<16x144xf32> -> vector<32x144xf32>
    %c0_42 = arith.constant 0 : index
    %c0_43 = arith.constant 0 : index
    %c0_44 = arith.constant 0 : index
    %71 = vector.load %arg5[%c0_42, %c0_43, %c0_44] : memref<3x144x128xf32, #tpu.memory_space<vmem>>, vector<1x144x128xf32>
    %72 = vector.shape_cast %71 : vector<1x144x128xf32> to vector<144x128xf32>
    %cst_45 = arith.constant dense<0.000000e+00> : vector<32x128xf32>
    %73 = tpu.matmul %70, %72, %cst_45 {dimension_numbers = #tpu.dot_dimension_numbers<[1], [0], [0], [1], [0, 0, 1, 1], [], []>} : vector<32x144xf32>, vector<144x128xf32>, vector<32x128xf32> -> vector<32x128xf32>
    %74 = vector.extract_strided_slice %67 {offsets = [1, 0], sizes = [16, 144], strides = [1, 1]} : vector<36x144xf32> to vector<16x144xf32>
    %75 = vector.extract_strided_slice %67 {offsets = [19, 0], sizes = [16, 144], strides = [1, 1]} : vector<36x144xf32> to vector<16x144xf32>
    %76 = tpu.concatenate %74, %75 in 0 : vector<16x144xf32>, vector<16x144xf32> -> vector<32x144xf32>
    %c1_46 = arith.constant 1 : index
    %c0_47 = arith.constant 0 : index
    %c0_48 = arith.constant 0 : index
    %77 = vector.load %arg5[%c1_46, %c0_47, %c0_48] : memref<3x144x128xf32, #tpu.memory_space<vmem>>, vector<1x144x128xf32>
    %78 = vector.shape_cast %77 : vector<1x144x128xf32> to vector<144x128xf32>
    %cst_49 = arith.constant dense<0.000000e+00> : vector<32x128xf32>
    %79 = tpu.matmul %76, %78, %cst_49 {dimension_numbers = #tpu.dot_dimension_numbers<[1], [0], [0], [1], [0, 0, 1, 1], [], []>} : vector<32x144xf32>, vector<144x128xf32>, vector<32x128xf32> -> vector<32x128xf32>
    %80 = arith.addf %73, %79 : vector<32x128xf32>
    %81 = vector.extract_strided_slice %67 {offsets = [2, 0], sizes = [16, 144], strides = [1, 1]} : vector<36x144xf32> to vector<16x144xf32>
    %82 = vector.extract_strided_slice %67 {offsets = [20, 0], sizes = [16, 144], strides = [1, 1]} : vector<36x144xf32> to vector<16x144xf32>
    %83 = tpu.concatenate %81, %82 in 0 : vector<16x144xf32>, vector<16x144xf32> -> vector<32x144xf32>
    %c2_50 = arith.constant 2 : index
    %c0_51 = arith.constant 0 : index
    %c0_52 = arith.constant 0 : index
    %84 = vector.load %arg5[%c2_50, %c0_51, %c0_52] : memref<3x144x128xf32, #tpu.memory_space<vmem>>, vector<1x144x128xf32>
    %85 = vector.shape_cast %84 : vector<1x144x128xf32> to vector<144x128xf32>
    %cst_53 = arith.constant dense<0.000000e+00> : vector<32x128xf32>
    %86 = tpu.matmul %83, %85, %cst_53 {dimension_numbers = #tpu.dot_dimension_numbers<[1], [0], [0], [1], [0, 0, 1, 1], [], []>} : vector<32x144xf32>, vector<144x128xf32>, vector<32x128xf32> -> vector<32x128xf32>
    %87 = arith.addf %80, %86 : vector<32x128xf32>
    %c0_54 = arith.constant 0 : index
    %c0_55 = arith.constant 0 : index
    %88 = vector.load %arg11[%c0_54, %c0_55] : memref<3x8xf32, #tpu.memory_space<vmem>>, vector<3x8xf32>
    %89 = vector.extract_strided_slice %88 {offsets = [0, 0], sizes = [1, 8], strides = [1, 1]} : vector<3x8xf32> to vector<1x8xf32>
    %c0_56 = arith.constant 0 : index
    %c0_57 = arith.constant 0 : index
    %90 = vector.load %arg9[%c0_56, %c0_57] : memref<8x128xf32, #tpu.memory_space<vmem>>, vector<8x128xf32>
    %cst_58 = arith.constant dense<0.000000e+00> : vector<1x128xf32>
    %91 = tpu.matmul %89, %90, %cst_58 {dimension_numbers = #tpu.dot_dimension_numbers<[1], [0], [0], [1], [0, 0, 1, 1], [], []>} : vector<1x8xf32>, vector<8x128xf32>, vector<1x128xf32> -> vector<1x128xf32>
    %92 = vector.broadcast %91 : vector<1x128xf32> to vector<32x128xf32>
    %93 = arith.addf %87, %92 : vector<32x128xf32>
    %cst_59 = arith.constant dense<0.000000e+00> : vector<128xf32>
    %94 = vector.multi_reduction <add>, %93, %cst_59 [0] : vector<32x128xf32> to vector<128xf32>
    %95 = vector.shape_cast %94 : vector<128xf32> to vector<1x128xf32>
    %c0_60 = arith.constant 0 : index
    %c0_61 = arith.constant 0 : index
    %96 = vector.load %arg8[%c0_60, %c0_61] : memref<128x8xf32, #tpu.memory_space<vmem>>, vector<128x8xf32>
    %cst_62 = arith.constant dense<0.000000e+00> : vector<1x8xf32>
    %97 = tpu.matmul %95, %96, %cst_62 {dimension_numbers = #tpu.dot_dimension_numbers<[1], [0], [0], [1], [0, 0, 1, 1], [], []>} : vector<1x128xf32>, vector<128x8xf32>, vector<1x8xf32> -> vector<1x8xf32>
    %98 = arith.mulf %93, %93 : vector<32x128xf32>
    %cst_63 = arith.constant dense<0.000000e+00> : vector<128xf32>
    %99 = vector.multi_reduction <add>, %98, %cst_63 [0] : vector<32x128xf32> to vector<128xf32>
    %100 = vector.shape_cast %99 : vector<128xf32> to vector<1x128xf32>
    %c0_64 = arith.constant 0 : index
    %c0_65 = arith.constant 0 : index
    %101 = vector.load %arg8[%c0_64, %c0_65] : memref<128x8xf32, #tpu.memory_space<vmem>>, vector<128x8xf32>
    %cst_66 = arith.constant dense<0.000000e+00> : vector<1x8xf32>
    %102 = tpu.matmul %100, %101, %cst_66 {dimension_numbers = #tpu.dot_dimension_numbers<[1], [0], [0], [1], [0, 0, 1, 1], [], []>} : vector<1x128xf32>, vector<128x8xf32>, vector<1x8xf32> -> vector<1x8xf32>
    %cst_67 = arith.constant 0.001953125 : f32
    %103 = vector.broadcast %cst_67 : f32 to vector<1x8xf32>
    %104 = arith.mulf %97, %103 : vector<1x8xf32>
    %cst_68 = arith.constant 0.001953125 : f32
    %105 = vector.broadcast %cst_68 : f32 to vector<1x8xf32>
    %106 = arith.mulf %102, %105 : vector<1x8xf32>
    %107 = arith.mulf %104, %104 : vector<1x8xf32>
    %108 = arith.subf %106, %107 : vector<1x8xf32>
    %cst_69 = arith.constant 0.000000e+00 : f32
    %109 = vector.broadcast %cst_69 : f32 to vector<1x8xf32>
    %110 = arith.maximumf %108, %109 : vector<1x8xf32>
    %111 = vector.extract_strided_slice %88 {offsets = [1, 0], sizes = [1, 8], strides = [1, 1]} : vector<3x8xf32> to vector<1x8xf32>
    %cst_70 = arith.constant 9.99999974E-6 : f32
    %112 = vector.broadcast %cst_70 : f32 to vector<1x8xf32>
    %113 = arith.addf %110, %112 : vector<1x8xf32>
    %114 = math.rsqrt %113 : vector<1x8xf32>
    %115 = arith.mulf %111, %114 : vector<1x8xf32>
    %116 = vector.extract_strided_slice %88 {offsets = [2, 0], sizes = [1, 8], strides = [1, 1]} : vector<3x8xf32> to vector<1x8xf32>
    %117 = arith.mulf %104, %115 : vector<1x8xf32>
    %118 = arith.subf %116, %117 : vector<1x8xf32>
    %c0_71 = arith.constant 0 : index
    %c0_72 = arith.constant 0 : index
    %119 = vector.load %arg9[%c0_71, %c0_72] : memref<8x128xf32, #tpu.memory_space<vmem>>, vector<8x128xf32>
    %cst_73 = arith.constant dense<0.000000e+00> : vector<1x128xf32>
    %120 = tpu.matmul %115, %119, %cst_73 {dimension_numbers = #tpu.dot_dimension_numbers<[1], [0], [0], [1], [0, 0, 1, 1], [], []>} : vector<1x8xf32>, vector<8x128xf32>, vector<1x128xf32> -> vector<1x128xf32>
    %121 = vector.broadcast %120 : vector<1x128xf32> to vector<32x128xf32>
    %122 = arith.mulf %93, %121 : vector<32x128xf32>
    %c0_74 = arith.constant 0 : index
    %c0_75 = arith.constant 0 : index
    %123 = vector.load %arg9[%c0_74, %c0_75] : memref<8x128xf32, #tpu.memory_space<vmem>>, vector<8x128xf32>
    %cst_76 = arith.constant dense<0.000000e+00> : vector<1x128xf32>
    %124 = tpu.matmul %118, %123, %cst_76 {dimension_numbers = #tpu.dot_dimension_numbers<[1], [0], [0], [1], [0, 0, 1, 1], [], []>} : vector<1x8xf32>, vector<8x128xf32>, vector<1x128xf32> -> vector<1x128xf32>
    %125 = vector.broadcast %124 : vector<1x128xf32> to vector<32x128xf32>
    %126 = arith.addf %122, %125 : vector<32x128xf32>
    %cst_77 = arith.constant 0.000000e+00 : f32
    %127 = vector.broadcast %cst_77 : f32 to vector<32x128xf32>
    %128 = arith.maximumf %126, %127 : vector<32x128xf32>
    %c0_78 = arith.constant 0 : index
    %c0_79 = arith.constant 0 : index
    %129 = vector.load %arg12[%c0_78, %c0_79] : memref<32x128xf32, #tpu.memory_space<vmem>>, vector<32x128xf32>
    tpu.vector_store %arg12[%c0_78, %c0_79], %128 {strides = array<i32>} : memref<32x128xf32, #tpu.memory_space<vmem>>, vector<32x128xf32>,
    return
  }
}

</mosaic_0001>

<llo_original>
// kernel: tpu_custom_call.1
$region0: #{tpu_custom_call.1}
  #allocation0 [shape = 'u32[]', space=smem, size = 0x4, offset = 0x4, fixed_abs, tag = 'smem constant byte address 0x4 - core index']
  #allocation1 [shape = 'u32[144,128]{1,0:T(1,128)}', space=vmem, size = 0x12000, scoped, tag = 'internal scratch']
  %s0 = inlined_call_operand.vmem [shape: f32[16,32], index: 0, kind: input, shape index: {}]
  %s1 = inlined_call_operand.vmem [shape: f32[40,80], index: 1, kind: input, shape index: {}]
  %s2 = inlined_call_operand.vmem [shape: f32[40,16], index: 2, kind: input, shape index: {}]
  %s3 = inlined_call_operand.vmem [shape: f32[32,80], index: 3, kind: input, shape index: {}]
  %s4 = inlined_call_operand.vmem [shape: f32[3,80,144], index: 4, kind: input, shape index: {}]
  %s5 = inlined_call_operand.vmem [shape: f32[3,144,128], index: 5, kind: input, shape index: {}]
  %s6 = inlined_call_operand.vmem [shape: f32[144,8], index: 6, kind: input, shape index: {}]
  %s7 = inlined_call_operand.vmem [shape: f32[8,144], index: 7, kind: input, shape index: {}]
  %s8 = inlined_call_operand.vmem [shape: f32[128,8], index: 8, kind: input, shape index: {}]
  %s9 = inlined_call_operand.vmem [shape: f32[8,128], index: 9, kind: input, shape index: {}]
  %s10 = inlined_call_operand.vmem [shape: f32[3,8], index: 10, kind: input, shape index: {}]
  %s11 = inlined_call_operand.vmem [shape: f32[3,8], index: 11, kind: input, shape index: {}]
  %s12 = inlined_call_operand.hbm [shape: f32[32,128], index: 12, kind: output, shape index: {}]
  %s13 = sld [smem:[#allocation0]]
  $region58: #{tpu_custom_call.1} parent=0
    _
  %s15 = ssub.s32 1, %s13
  %s16 = scalar_select 0, %s15, %s13
  $region1: #{tpu_custom_call.1} parent=0
    #allocation2 [shape = 'u8[16384]{0}', space=vmem, size = 0x4000, scoped, tag = 'output window, operand 0, single buffered']
    #allocation3 [shape = 's32[1]{0}', space=sflag, size = 0x4, scoped, tag = 'scoped memory for tpu_custom_call.1']
    %17 = vsyncpa [#allocation3], 0
    // Predicated region
    $region2: #{tpu_custom_call.1} parent=1 // pred_check
      _
    $region3: #{tpu_custom_call.1} parent=1 // pred_check_branch
      %19 = sbr.rel (0) target = $region5
    $region4: #{tpu_custom_call.1} parent=1 // pred_region
      _
    $region5: #{tpu_custom_call.1} parent=1 // pred_fallthru
      _
    // Predicated region
    $region6: #{tpu_custom_call.1} parent=1 // pred_check
      _
    $region7: #{tpu_custom_call.1} parent=1 // pred_check_branch
      %21 = sbr.rel (0) target = $region9
    $region8: #{tpu_custom_call.1} parent=1 // pred_region
      _
    $region9: #{tpu_custom_call.1} parent=1 // pred_fallthru
      _
    // Predicated region
    $region10: #{tpu_custom_call.1} parent=1 // pred_check
      _
    $region11: #{tpu_custom_call.1} parent=1 // pred_check_branch
      %23 = sbr.rel (0) target = $region13
    $region12: #{tpu_custom_call.1} parent=1 // pred_region
      _
    $region13: #{tpu_custom_call.1} parent=1 // pred_fallthru
      _
    // Predicated region
    $region14: #{tpu_custom_call.1} parent=1 // pred_check
      _
    $region15: #{tpu_custom_call.1} parent=1 // pred_check_branch
      %25 = sbr.rel (0) target = $region17
    $region16: #{tpu_custom_call.1} parent=1 // pred_region
      _
    $region17: #{tpu_custom_call.1} parent=1 // pred_fallthru
      _
    // Predicated region
    $region18: #{tpu_custom_call.1} parent=1 // pred_check
      _
    $region19: #{tpu_custom_call.1} parent=1 // pred_check_branch
      %27 = sbr.rel (0) target = $region21
    $region20: #{tpu_custom_call.1} parent=1 // pred_region
      _
    $region21: #{tpu_custom_call.1} parent=1 // pred_fallthru
      _
    // Predicated region
    $region22: #{tpu_custom_call.1} parent=1 // pred_check
      _
    $region23: #{tpu_custom_call.1} parent=1 // pred_check_branch
      %29 = sbr.rel (0) target = $region25
    $region24: #{tpu_custom_call.1} parent=1 // pred_region
      _
    $region25: #{tpu_custom_call.1} parent=1 // pred_fallthru
      _
    // Predicated region
    $region26: #{tpu_custom_call.1} parent=1 // pred_check
      _
    $region27: #{tpu_custom_call.1} parent=1 // pred_check_branch
      %31 = sbr.rel (0) target = $region29
    $region28: #{tpu_custom_call.1} parent=1 // pred_region
      _
    $region29: #{tpu_custom_call.1} parent=1 // pred_fallthru
      _
    // Predicated region
    $region30: #{tpu_custom_call.1} parent=1 // pred_check
      _
    $region31: #{tpu_custom_call.1} parent=1 // pred_check_branch
      %33 = sbr.rel (0) target = $region33
    $region32: #{tpu_custom_call.1} parent=1 // pred_region
      _
    $region33: #{tpu_custom_call.1} parent=1 // pred_fallthru
      _
    // Predicated region
    $region34: #{tpu_custom_call.1} parent=1 // pred_check
      _
    $region35: #{tpu_custom_call.1} parent=1 // pred_check_branch
      %35 = sbr.rel (0) target = $region37
    $region36: #{tpu_custom_call.1} parent=1 // pred_region
      _
    $region37: #{tpu_custom_call.1} parent=1 // pred_fallthru
      _
    // Predicated region
    $region38: #{tpu_custom_call.1} parent=1 // pred_check
      _
    $region39: #{tpu_custom_call.1} parent=1 // pred_check_branch
      %37 = sbr.rel (0) target = $region41
    $region40: #{tpu_custom_call.1} parent=1 // pred_region
      _
    $region41: #{tpu_custom_call.1} parent=1 // pred_fallthru
      _
    // Predicated region
    $region42: #{tpu_custom_call.1} parent=1 // pred_check
      _
    $region43: #{tpu_custom_call.1} parent=1 // pred_check_branch
      %39 = sbr.rel (0) target = $region45
    $region44: #{tpu_custom_call.1} parent=1 // pred_region
      _
    $region45: #{tpu_custom_call.1} parent=1 // pred_fallthru
      _
    // Predicated region
    $region46: #{tpu_custom_call.1} parent=1 // pred_check
      _
    $region47: #{tpu_custom_call.1} parent=1 // pred_check_branch
      %41 = sbr.rel (0) target = $region49
    $region48: #{tpu_custom_call.1} parent=1 // pred_region
      _
    $region49: #{tpu_custom_call.1} parent=1 // pred_fallthru
      _
    %v42 = vld [vmem:[%s0] sm:$0xff]
    %v43 = vld [vmem:[%s0 + $0x8] sm:$0xff]
    %v44 = vld [vmem:[%s3] sm:$0xff]
    %v45 = vld [vmem:[%s3 + $0x8] sm:$0xff]
    %v46 = vld [vmem:[%s3 + $0x10] sm:$0xff]
    %v47 = vld [vmem:[%s3 + $0x18] sm:$0xff]
    %vm48 = vcmask 261120
    %v50 = vsel %vm48, %v42, 0
    %v53 = vsel %vm48, %v43, 0
    %55 = vmatprep.subr.mxu0 0.0
    %56 = vmatpush1.msra.mxu0 %v44
    %57 = vmatprep.subr.mxu0 0.0
    %58 = vmatpush1.msra.mxu0 %v45
    %59 = vmatprep.subr.mxu0 0.0
    %60 = vmatpush1.msra.mxu0 %v46
    %61 = vmatprep.subr.mxu0 0.0
    %62 = vmatpush1.msra.mxu0 %v47
    %63 = vmatprep.subr.mxu0 0.0
    %64 = vmatpush1.msra.mxu0 0.0
    %65 = vmatprep.subr.mxu0 0.0
    %66 = vmatpush1.msra.mxu0 0.0
    %67 = vmatprep.subr.mxu0 0.0
    %68 = vmatpush1.msra.mxu0 0.0
    %69 = vmatprep.subr.mxu0 0.0
    %70 = vmatpush1.msra.mxu0 0.0
    %71 = vmatprep.subr.mxu0 0.0
    %72 = vmatpush1.msra.mxu0 0.0
    %73 = vmatprep.subr.mxu0 0.0
    %74 = vmatpush1.msra.mxu0 0.0
    %75 = vmatprep.subr.mxu0 0.0
    %76 = vmatpush1.msra.mxu0 0.0
    %77 = vmatprep.subr.mxu0 0.0
    %78 = vmatpush1.msra.mxu0 0.0
    %79 = vmatprep.subr.mxu0 0.0
    %80 = vmatpush1.msra.mxu0 0.0
    %81 = vmatprep.subr.mxu0 0.0
    %82 = vmatpush1.msra.mxu0 0.0
    %83 = vmatprep.subr.mxu0 0.0
    %84 = vmatpush1.msra.mxu0 0.0
    %85 = vmatprep.subr.mxu0 0.0
    %86 = vmatpush1.msra.mxu0 0.0
    %87 = vmatprep.subr.mxu0 0.0
    %88 = vmatpush1.msra.mxu0 0.0
    %89 = vmatprep.subr.mxu0 0.0
    %90 = vmatpush1.msra.mxu0 0.0
    %91 = vmatprep.subr.mxu0 0.0
    %92 = vmatpush1.msra.mxu0 0.0
    %93 = vmatprep.subr.mxu0 0.0
    %94 = vmatpush1.msra.mxu0 0.0
    %95 = vmatprep.subr.mxu0 0.0
    %96 = vmatpush1.msra.mxu0 0.0
    %97 = vmatprep.subr.mxu0 0.0
    %98 = vmatpush1.msra.mxu0 0.0
    %99 = vmatprep.subr.mxu0 0.0
    %100 = vmatpush1.msra.mxu0 0.0
    %101 = vmatprep.subr.mxu0 0.0
    %102 = vmatpush1.msra.mxu0 0.0
    %103 = vmatprep.subr.mxu0 0.0
    %104 = vmatpush1.msra.mxu0 0.0
    %105 = vmatprep.subr.mxu0 0.0
    %106 = vmatpush1.msra.mxu0 0.0
    %107 = vmatprep.subr.mxu0 0.0
    %108 = vmatpush1.msra.mxu0 0.0
    %109 = vmatprep.subr.mxu0 0.0
    %110 = vmatpush1.msra.mxu0 0.0
    %111 = vmatprep.subr.mxu0 0.0
    %112 = vmatpush1.msra.mxu0 0.0
    %113 = vmatprep.subr.mxu0 0.0
    %114 = vmatpush1.msra.mxu0 0.0
    %115 = vmatprep.subr.mxu0 0.0
    %116 = vmatpush1.msra.mxu0 0.0
    %117 = vmatprep.subr.mxu0 0.0
    %118 = vmatpush1.msra.mxu0 0.0
    %119 = vmatprep.mubr.f32.mxu0 0.0
    %120 = vmatmul.mubr.f32.gmra.mrb[0].mxu0 %v50
    %v121 = vpop.f32.mrb[0].mxu0
    %v122 = vadd.f32 0.0, %v121
    %v123 = vpop.f32.mrb[0].mxu0
    %124 = vmatprep.mubr.f32.mxu0 0.0
    %125 = vmatmul.mubr.f32.gmra.mrb[0].mxu0 %v53
    %v126 = vpop.f32.mrb[0].mxu0
    %v127 = vadd.f32 0.0, %v126
    %v128 = vpop.f32.mrb[0].mxu0
    %129 = vdwg.mxu0
    %v130 = vld [vmem:[%s2] sm:$0xff]
    %v131 = vld [vmem:[%s2 + $0x8] sm:$0xff]
    %v132 = vld [vmem:[%s2 + $0x10] sm:$0xff]
    %v133 = vld [vmem:[%s2 + $0x18] sm:$0xff]
    %v134 = vld [vmem:[%s2 + $0x20] sm:$0xff]
    %v135 = vld [vmem:[%s1] sm:$0xff]
    %v136 = vld [vmem:[%s1 + $0x8] sm:$0xff]
    %v137 = vld [vmem:[%s1 + $0x10] sm:$0xff]
    %v138 = vld [vmem:[%s1 + $0x18] sm:$0xff]
    %v139 = vld [vmem:[%s1 + $0x20] sm:$0xff]
    %vm140 = vcmask 130048
    %v142 = vsel %vm140, %v130, 0
    %v145 = vsel %vm140, %v131, 0
    %v148 = vsel %vm140, %v132, 0
    %v151 = vsel %vm140, %v133, 0
    %v154 = vsel %vm140, %v134, 0
    %156 = vmatprep.subr.mxu0 0.0
    %157 = vmatpush1.msra.mxu0 %v122
    %158 = vmatprep.subr.mxu0 0.0
    %159 = vmatpush1.msra.mxu0 %v127
    %160 = vmatprep.subr.mxu0 0.0
    %161 = vmatpush1.msra.mxu0 0.0
    %162 = vmatprep.subr.mxu0 0.0
    %163 = vmatpush1.msra.mxu0 0.0
    %164 = vmatprep.subr.mxu0 0.0
    %165 = vmatpush1.msra.mxu0 0.0
    %166 = vmatprep.subr.mxu0 0.0
    %167 = vmatpush1.msra.mxu0 0.0
    %168 = vmatprep.subr.mxu0 0.0
    %169 = vmatpush1.msra.mxu0 0.0
    %170 = vmatprep.subr.mxu0 0.0
    %171 = vmatpush1.msra.mxu0 0.0
    %172 = vmatprep.subr.mxu0 0.0
    %173 = vmatpush1.msra.mxu0 0.0
    %174 = vmatprep.subr.mxu0 0.0
    %175 = vmatpush1.msra.mxu0 0.0
    %176 = vmatprep.subr.mxu0 0.0
    %177 = vmatpush1.msra.mxu0 0.0
    %178 = vmatprep.subr.mxu0 0.0
    %179 = vmatpush1.msra.mxu0 0.0
    %180 = vmatprep.subr.mxu0 0.0
    %181 = vmatpush1.msra.mxu0 0.0
    %182 = vmatprep.subr.mxu0 0.0
    %183 = vmatpush1.msra.mxu0 0.0
    %184 = vmatprep.subr.mxu0 0.0
    %185 = vmatpush1.msra.mxu0 0.0
    %186 = vmatprep.subr.mxu0 0.0
    %187 = vmatpush1.msra.mxu0 0.0
    %188 = vmatprep.subr.mxu0 0.0
    %189 = vmatpush1.msra.mxu0 0.0
    %190 = vmatprep.subr.mxu0 0.0
    %191 = vmatpush1.msra.mxu0 0.0
    %192 = vmatprep.subr.mxu0 0.0
    %193 = vmatpush1.msra.mxu0 0.0
    %194 = vmatprep.subr.mxu0 0.0
    %195 = vmatpush1.msra.mxu0 0.0
    %196 = vmatprep.subr.mxu0 0.0
    %197 = vmatpush1.msra.mxu0 0.0
    %198 = vmatprep.subr.mxu0 0.0
    %199 = vmatpush1.msra.mxu0 0.0
    %200 = vmatprep.subr.mxu0 0.0
    %201 = vmatpush1.msra.mxu0 0.0
    %202 = vmatprep.subr.mxu0 0.0
    %203 = vmatpush1.msra.mxu0 0.0
    %204 = vmatprep.subr.mxu0 0.0
    %205 = vmatpush1.msra.mxu0 0.0
    %206 = vmatprep.subr.mxu0 0.0
    %207 = vmatpush1.msra.mxu0 0.0
    %208 = vmatprep.subr.mxu0 0.0
    %209 = vmatpush1.msra.mxu0 0.0
    %210 = vmatprep.subr.mxu0 0.0
    %211 = vmatpush1.msra.mxu0 0.0
    %212 = vmatprep.subr.mxu0 0.0
    %213 = vmatpush1.msra.mxu0 0.0
    %214 = vmatprep.subr.mxu0 0.0
    %215 = vmatpush1.msra.mxu0 0.0
    %216 = vmatprep.subr.mxu0 0.0
    %217 = vmatpush1.msra.mxu0 0.0
    %218 = vmatprep.subr.mxu0 0.0
    %219 = vmatpush1.msra.mxu0 0.0
    %220 = vmatprep.mubr.f32.mxu0 0.0
    %221 = vmatmul.mubr.f32.gmra.mrb[0].mxu0 %v142
    %v222 = vpop.f32.mrb[0].mxu0
    %v223 = vadd.f32 %v135, %v222
    %v224 = vpop.f32.mrb[0].mxu0
    %225 = vmatprep.mubr.f32.mxu0 0.0
    %226 = vmatmul.mubr.f32.gmra.mrb[0].mxu0 %v145
    %v227 = vpop.f32.mrb[0].mxu0
    %v228 = vadd.f32 %v136, %v227
    %v229 = vpop.f32.mrb[0].mxu0
    %230 = vmatprep.mubr.f32.mxu0 0.0
    %231 = vmatmul.mubr.f32.gmra.mrb[0].mxu0 %v148
    %v232 = vpop.f32.mrb[0].mxu0
    %v233 = vadd.f32 %v137, %v232
    %v234 = vpop.f32.mrb[0].mxu0
    %235 = vmatprep.mubr.f32.mxu0 0.0
    %236 = vmatmul.mubr.f32.gmra.mrb[0].mxu0 %v151
    %v237 = vpop.f32.mrb[0].mxu0
    %v238 = vadd.f32 %v138, %v237
    %v239 = vpop.f32.mrb[0].mxu0
    %240 = vmatprep.mubr.f32.mxu0 0.0
    %241 = vmatmul.mubr.f32.gmra.mrb[0].mxu0 %v154
    %v242 = vpop.f32.mrb[0].mxu0
    %v243 = vadd.f32 %v139, %v242
    %v244 = vpop.f32.mrb[0].mxu0
    %245 = vdwg.mxu0
    %vm249 = vcmask 1045504
    %v250 = vrot.slane %v233, 2
    %v251 = vrot.slane %v238, 2
    %v252 = vsel %vm249, %v250, %v251
    %v253 = vrot.slane %v243, 2
    %v254 = vsel %vm249, %v251, %v253
    %vm256 = vcmask 1041408
    %v257 = vsel %vm256, %v233, %v252
    %v258 = vld [vmem:[%s4] sm:$0xff]
    %v259 = vld [vmem:[%s4 + $0x8] sm:$0xff]
    %v260 = vld [vmem:[%s4 + $0x10] sm:$0xff]
    %v261 = vld [vmem:[%s4 + $0x18] sm:$0xff]
    %v262 = vld [vmem:[%s4 + $0x20] sm:$0xff]
    %v263 = vld [vmem:[%s4 + $0x28] sm:$0xff]
    %v264 = vld [vmem:[%s4 + $0x30] sm:$0xff]
    %v265 = vld [vmem:[%s4 + $0x38] sm:$0xff]
    %v266 = vld [vmem:[%s4 + $0x40] sm:$0xff]
    %v267 = vld [vmem:[%s4 + $0x48] sm:$0xff]
    %v268 = vld [vmem:[%s4 + $0x50] sm:$0xff]
    %v269 = vld [vmem:[%s4 + $0x58] sm:$0xff]
    %v270 = vld [vmem:[%s4 + $0x60] sm:$0xff]
    %v271 = vld [vmem:[%s4 + $0x68] sm:$0xff]
    %v272 = vld [vmem:[%s4 + $0x70] sm:$0xff]
    %v273 = vld [vmem:[%s4 + $0x78] sm:$0xff]
    %v274 = vld [vmem:[%s4 + $0x80] sm:$0xff]
    %v275 = vld [vmem:[%s4 + $0x88] sm:$0xff]
    %v276 = vld [vmem:[%s4 + $0x90] sm:$0xff]
    %v277 = vld [vmem:[%s4 + $0x98] sm:$0xff]
    %vm280 = vcmask 1046528
    %v281 = vrot.slane %v223, 1
    %v282 = vrot.slane %v228, 1
    %v283 = vsel %vm280, %v281, %v282
    %v284 = vrot.slane %v233, 1
    %v285 = vsel %vm280, %v282, %v284
    %vm287 = vcmask 1044480
    %v288 = vrot.slane %v233, 3
    %v289 = vrot.slane %v238, 3
    %v290 = vsel %vm287, %v288, %v289
    %v291 = vrot.slane %v243, 3
    %v292 = vsel %vm287, %v289, %v291
    %v294 = vsel %vm256, %v284, %v290
    %s295 = scalar_lea.vmem %s4, 160
    %v296 = vld [vmem:[%s295] sm:$0xff]
    %v297 = vld [vmem:[%s295 + $0x8] sm:$0xff]
    %v298 = vld [vmem:[%s295 + $0x10] sm:$0xff]
    %v299 = vld [vmem:[%s295 + $0x18] sm:$0xff]
    %v300 = vld [vmem:[%s295 + $0x20] sm:$0xff]
    %v301 = vld [vmem:[%s295 + $0x28] sm:$0xff]
    %v302 = vld [vmem:[%s295 + $0x30] sm:$0xff]
    %v303 = vld [vmem:[%s295 + $0x38] sm:$0xff]
    %v304 = vld [vmem:[%s295 + $0x40] sm:$0xff]
    %v305 = vld [vmem:[%s295 + $0x48] sm:$0xff]
    %v306 = vld [vmem:[%s295 + $0x50] sm:$0xff]
    %v307 = vld [vmem:[%s295 + $0x58] sm:$0xff]
    %v308 = vld [vmem:[%s295 + $0x60] sm:$0xff]
    %v309 = vld [vmem:[%s295 + $0x68] sm:$0xff]
    %v310 = vld [vmem:[%s295 + $0x70] sm:$0xff]
    %v311 = vld [vmem:[%s295 + $0x78] sm:$0xff]
    %v312 = vld [vmem:[%s295 + $0x80] sm:$0xff]
    %v313 = vld [vmem:[%s295 + $0x88] sm:$0xff]
    %v314 = vld [vmem:[%s295 + $0x90] sm:$0xff]
    %v315 = vld [vmem:[%s295 + $0x98] sm:$0xff]
    %vm316 = vcmask 654336
    %v317 = vsel %vm316, %v283, 0
    %v319 = vsel %vm316, %v285, 0
    %v322 = vsel %vm316, %v294, 0
    %v324 = vsel %vm316, %v292, 0
    %v326 = vsel %vm316, %v291, 0
    %328 = vmatprep.subr.mxu0 %v297
    %329 = vmatpush1.msra.mxu0 %v296
    %330 = vmatprep.subr.mxu0 %v299
    %331 = vmatpush1.msra.mxu0 %v298
    %332 = vmatprep.subr.mxu0 %v301
    %333 = vmatpush1.msra.mxu0 %v300
    %334 = vmatprep.subr.mxu0 %v303
    %335 = vmatpush1.msra.mxu0 %v302
    %336 = vmatprep.subr.mxu0 %v305
    %337 = vmatpush1.msra.mxu0 %v304
    %338 = vmatprep.subr.mxu0 %v307
    %339 = vmatpush1.msra.mxu0 %v306
    %340 = vmatprep.subr.mxu0 %v309
    %341 = vmatpush1.msra.mxu0 %v308
    %342 = vmatprep.subr.mxu0 %v311
    %343 = vmatpush1.msra.mxu0 %v310
    %344 = vmatprep.subr.mxu0 %v313
    %345 = vmatpush1.msra.mxu0 %v312
    %346 = vmatprep.subr.mxu0 %v315
    %347 = vmatpush1.msra.mxu0 %v314
    %348 = vmatprep.subr.mxu0 0.0
    %349 = vmatpush1.msra.mxu0 0.0
    %350 = vmatprep.subr.mxu0 0.0
    %351 = vmatpush1.msra.mxu0 0.0
    %352 = vmatprep.subr.mxu0 0.0
    %353 = vmatpush1.msra.mxu0 0.0
    %354 = vmatprep.subr.mxu0 0.0
    %355 = vmatpush1.msra.mxu0 0.0
    %356 = vmatprep.subr.mxu0 0.0
    %357 = vmatpush1.msra.mxu0 0.0
    %358 = vmatprep.subr.mxu0 0.0
    %359 = vmatpush1.msra.mxu0 0.0
    %360 = vmatprep.subr.mxu0 0.0
    %361 = vmatpush1.msra.mxu0 0.0
    %362 = vmatprep.subr.mxu0 0.0
    %363 = vmatpush1.msra.mxu0 0.0
    %364 = vmatprep.subr.mxu0 0.0
    %365 = vmatpush1.msra.mxu0 0.0
    %366 = vmatprep.subr.mxu0 0.0
    %367 = vmatpush1.msra.mxu0 0.0
    %368 = vmatprep.subr.mxu0 0.0
    %369 = vmatpush1.msra.mxu0 0.0
    %370 = vmatprep.subr.mxu0 0.0
    %371 = vmatpush1.msra.mxu0 0.0
    %372 = vmatprep.subr.mxu0 0.0
    %373 = vmatpush1.msra.mxu0 0.0
    %374 = vmatprep.subr.mxu0 0.0
    %375 = vmatpush1.msra.mxu0 0.0
    %376 = vmatprep.subr.mxu0 0.0
    %377 = vmatpush1.msra.mxu0 0.0
    %378 = vmatprep.subr.mxu0 0.0
    %379 = vmatpush1.msra.mxu0 0.0
    %380 = vmatprep.subr.mxu0 0.0
    %381 = vmatpush1.msra.mxu0 0.0
    %382 = vmatprep.subr.mxu0 0.0
    %383 = vmatpush1.msra.mxu0 0.0
    %384 = vmatprep.subr.mxu0 0.0
    %385 = vmatpush1.msra.mxu0 0.0
    %386 = vmatprep.subr.mxu0 0.0
    %387 = vmatpush1.msra.mxu0 0.0
    %388 = vmatprep.subr.mxu0 0.0
    %389 = vmatpush1.msra.mxu0 0.0
    %390 = vmatprep.subr.mxu0 0.0
    %391 = vmatpush1.msra.mxu0 0.0
    %392 = vmatprep.mubr.f32.mxu0 0.0
    %393 = vmatmul.mubr.f32.gmra.mrb[0].mxu0 %v317
    %v394 = vpop.f32.mrb[0].mxu0
    %v395 = vadd.f32 0.0, %v394
    %v396 = vpop.f32.mrb[0].mxu0
    %v397 = vadd.f32 0.0, %v396
    %398 = vmatprep.mubr.f32.mxu0 0.0
    %399 = vmatmul.mubr.f32.gmra.mrb[0].mxu0 %v319
    %v400 = vpop.f32.mrb[0].mxu0
    %v401 = vadd.f32 0.0, %v400
    %v402 = vpop.f32.mrb[0].mxu0
    %v403 = vadd.f32 0.0, %v402
    %404 = vmatprep.mubr.f32.mxu0 0.0
    %405 = vmatmul.mubr.f32.gmra.mrb[0].mxu0 %v322
    %v406 = vpop.f32.mrb[0].mxu0
    %v407 = vadd.f32 0.0, %v406
    %v408 = vpop.f32.mrb[0].mxu0
    %v409 = vadd.f32 0.0, %v408
    %410 = vmatprep.mubr.f32.mxu0 0.0
    %411 = vmatmul.mubr.f32.gmra.mrb[0].mxu0 %v324
    %v412 = vpop.f32.mrb[0].mxu0
    %v413 = vadd.f32 0.0, %v412
    %v414 = vpop.f32.mrb[0].mxu0
    %v415 = vadd.f32 0.0, %v414
    %416 = vmatprep.mubr.f32.mxu0 0.0
    %417 = vmatmul.mubr.f32.gmra.mrb[0].mxu0 %v326
    %v418 = vpop.f32.mrb[0].mxu0
    %v419 = vadd.f32 0.0, %v418
    %v420 = vpop.f32.mrb[0].mxu0
    %v421 = vadd.f32 0.0, %v420
    %422 = vdwg.mxu0
    %v423 = vsel %vm316, %v223, 0
    %v425 = vsel %vm316, %v228, 0
    %v428 = vsel %vm316, %v257, 0
    %v430 = vsel %vm316, %v254, 0
    %v432 = vsel %vm316, %v253, 0
    %434 = vmatprep.subr.mxu0 %v259
    %435 = vmatpush1.msra.mxu0 %v258
    %436 = vmatprep.subr.mxu0 %v261
    %437 = vmatpush1.msra.mxu0 %v260
    %438 = vmatprep.subr.mxu0 %v263
    %439 = vmatpush1.msra.mxu0 %v262
    %440 = vmatprep.subr.mxu0 %v265
    %441 = vmatpush1.msra.mxu0 %v264
    %442 = vmatprep.subr.mxu0 %v267
    %443 = vmatpush1.msra.mxu0 %v266
    %444 = vmatprep.subr.mxu0 %v269
    %445 = vmatpush1.msra.mxu0 %v268
    %446 = vmatprep.subr.mxu0 %v271
    %447 = vmatpush1.msra.mxu0 %v270
    %448 = vmatprep.subr.mxu0 %v273
    %449 = vmatpush1.msra.mxu0 %v272
    %450 = vmatprep.subr.mxu0 %v275
    %451 = vmatpush1.msra.mxu0 %v274
    %452 = vmatprep.subr.mxu0 %v277
    %453 = vmatpush1.msra.mxu0 %v276
    %454 = vmatprep.subr.mxu0 0.0
    %455 = vmatpush1.msra.mxu0 0.0
    %456 = vmatprep.subr.mxu0 0.0
    %457 = vmatpush1.msra.mxu0 0.0
    %458 = vmatprep.subr.mxu0 0.0
    %459 = vmatpush1.msra.mxu0 0.0
    %460 = vmatprep.subr.mxu0 0.0
    %461 = vmatpush1.msra.mxu0 0.0
    %462 = vmatprep.subr.mxu0 0.0
    %463 = vmatpush1.msra.mxu0 0.0
    %464 = vmatprep.subr.mxu0 0.0
    %465 = vmatpush1.msra.mxu0 0.0
    %466 = vmatprep.subr.mxu0 0.0
    %467 = vmatpush1.msra.mxu0 0.0
    %468 = vmatprep.subr.mxu0 0.0
    %469 = vmatpush1.msra.mxu0 0.0
    %470 = vmatprep.subr.mxu0 0.0
    %471 = vmatpush1.msra.mxu0 0.0
    %472 = vmatprep.subr.mxu0 0.0
    %473 = vmatpush1.msra.mxu0 0.0
    %474 = vmatprep.subr.mxu0 0.0
    %475 = vmatpush1.msra.mxu0 0.0
    %476 = vmatprep.subr.mxu0 0.0
    %477 = vmatpush1.msra.mxu0 0.0
    %478 = vmatprep.subr.mxu0 0.0
    %479 = vmatpush1.msra.mxu0 0.0
    %480 = vmatprep.subr.mxu0 0.0
    %481 = vmatpush1.msra.mxu0 0.0
    %482 = vmatprep.subr.mxu0 0.0
    %483 = vmatpush1.msra.mxu0 0.0
    %484 = vmatprep.subr.mxu0 0.0
    %485 = vmatpush1.msra.mxu0 0.0
    %486 = vmatprep.subr.mxu0 0.0
    %487 = vmatpush1.msra.mxu0 0.0
    %488 = vmatprep.subr.mxu0 0.0
    %489 = vmatpush1.msra.mxu0 0.0
    %490 = vmatprep.subr.mxu0 0.0
    %491 = vmatpush1.msra.mxu0 0.0
    %492 = vmatprep.subr.mxu0 0.0
    %493 = vmatpush1.msra.mxu0 0.0
    %494 = vmatprep.subr.mxu0 0.0
    %495 = vmatpush1.msra.mxu0 0.0
    %496 = vmatprep.subr.mxu0 0.0
    %497 = vmatpush1.msra.mxu0 0.0
    %498 = vmatprep.mubr.f32.mxu0 0.0
    %499 = vmatmul.mubr.f32.gmra.mrb[0].mxu0 %v423
    %v500 = vpop.f32.mrb[0].mxu0
    %v501 = vadd.f32 %v395, %v500
    %v502 = vpop.f32.mrb[0].mxu0
    %v503 = vadd.f32 %v397, %v502
    %504 = vmatprep.mubr.f32.mxu0 0.0
    %505 = vmatmul.mubr.f32.gmra.mrb[0].mxu0 %v425
    %v506 = vpop.f32.mrb[0].mxu0
    %v507 = vadd.f32 %v401, %v506
    %v508 = vpop.f32.mrb[0].mxu0
    %v509 = vadd.f32 %v403, %v508
    %510 = vmatprep.mubr.f32.mxu0 0.0
    %511 = vmatmul.mubr.f32.gmra.mrb[0].mxu0 %v428
    %v512 = vpop.f32.mrb[0].mxu0
    %v513 = vadd.f32 %v407, %v512
    %v514 = vpop.f32.mrb[0].mxu0
    %v515 = vadd.f32 %v409, %v514
    %516 = vmatprep.mubr.f32.mxu0 0.0
    %517 = vmatmul.mubr.f32.gmra.mrb[0].mxu0 %v430
    %v518 = vpop.f32.mrb[0].mxu0
    %v519 = vadd.f32 %v413, %v518
    %v520 = vpop.f32.mrb[0].mxu0
    %v521 = vadd.f32 %v415, %v520
    %522 = vmatprep.mubr.f32.mxu0 0.0
    %523 = vmatmul.mubr.f32.gmra.mrb[0].mxu0 %v432
    %v524 = vpop.f32.mrb[0].mxu0
    %v525 = vadd.f32 %v419, %v524
    %v526 = vpop.f32.mrb[0].mxu0
    %v527 = vadd.f32 %v421, %v526
    %528 = vdwg.mxu0
    %v529 = vrot.slane %v223, 2
    %v530 = vrot.slane %v228, 2
    %v531 = vsel %vm249, %v529, %v530
    %v532 = vsel %vm249, %v530, %v250
    %vm534 = vcmask 1043456
    %v535 = vrot.slane %v233, 4
    %v536 = vrot.slane %v238, 4
    %v537 = vsel %vm534, %v535, %v536
    %v538 = vrot.slane %v243, 4
    %v539 = vsel %vm534, %v536, %v538
    %v541 = vsel %vm256, %v250, %v537
    %s542 = scalar_lea.vmem %s4, 320
    %v543 = vld [vmem:[%s542] sm:$0xff]
    %v544 = vld [vmem:[%s542 + $0x8] sm:$0xff]
    %v545 = vld [vmem:[%s542 + $0x10] sm:$0xff]
    %v546 = vld [vmem:[%s542 + $0x18] sm:$0xff]
    %v547 = vld [vmem:[%s542 + $0x20] sm:$0xff]
    %v548 = vld [vmem:[%s542 + $0x28] sm:$0xff]
    %v549 = vld [vmem:[%s542 + $0x30] sm:$0xff]
    %v550 = vld [vmem:[%s542 + $0x38] sm:$0xff]
    %v551 = vld [vmem:[%s542 + $0x40] sm:$0xff]
    %v552 = vld [vmem:[%s542 + $0x48] sm:$0xff]
    %v553 = vld [vmem:[%s542 + $0x50] sm:$0xff]
    %v554 = vld [vmem:[%s542 + $0x58] sm:$0xff]
    %v555 = vld [vmem:[%s542 + $0x60] sm:$0xff]
    %v556 = vld [vmem:[%s542 + $0x68] sm:$0xff]
    %v557 = vld [vmem:[%s542 + $0x70] sm:$0xff]
    %v558 = vld [vmem:[%s542 + $0x78] sm:$0xff]
    %v559 = vld [vmem:[%s542 + $0x80] sm:$0xff]
    %v560 = vld [vmem:[%s542 + $0x88] sm:$0xff]
    %v561 = vld [vmem:[%s542 + $0x90] sm:$0xff]
    %v562 = vld [vmem:[%s542 + $0x98] sm:$0xff]
    %v563 = vsel %vm316, %v531, 0
    %v565 = vsel %vm316, %v532, 0
    %v568 = vsel %vm316, %v541, 0
    %v570 = vsel %vm316, %v539, 0
    %v572 = vsel %vm316, %v538, 0
    %574 = vmatprep.subr.mxu0 %v544
    %575 = vmatpush1.msra.mxu0 %v543
    %576 = vmatprep.subr.mxu0 %v546
    %577 = vmatpush1.msra.mxu0 %v545
    %578 = vmatprep.subr.mxu0 %v548
    %579 = vmatpush1.msra.mxu0 %v547
    %580 = vmatprep.subr.mxu0 %v550
    %581 = vmatpush1.msra.mxu0 %v549
    %582 = vmatprep.subr.mxu0 %v552
    %583 = vmatpush1.msra.mxu0 %v551
    %584 = vmatprep.subr.mxu0 %v554
    %585 = vmatpush1.msra.mxu0 %v553
    %586 = vmatprep.subr.mxu0 %v556
    %587 = vmatpush1.msra.mxu0 %v555
    %588 = vmatprep.subr.mxu0 %v558
    %589 = vmatpush1.msra.mxu0 %v557
    %590 = vmatprep.subr.mxu0 %v560
    %591 = vmatpush1.msra.mxu0 %v559
    %592 = vmatprep.subr.mxu0 %v562
    %593 = vmatpush1.msra.mxu0 %v561
    %594 = vmatprep.subr.mxu0 0.0
    %595 = vmatpush1.msra.mxu0 0.0
    %596 = vmatprep.subr.mxu0 0.0
    %597 = vmatpush1.msra.mxu0 0.0
    %598 = vmatprep.subr.mxu0 0.0
    %599 = vmatpush1.msra.mxu0 0.0
    %600 = vmatprep.subr.mxu0 0.0
    %601 = vmatpush1.msra.mxu0 0.0
    %602 = vmatprep.subr.mxu0 0.0
    %603 = vmatpush1.msra.mxu0 0.0
    %604 = vmatprep.subr.mxu0 0.0
    %605 = vmatpush1.msra.mxu0 0.0
    %606 = vmatprep.subr.mxu0 0.0
    %607 = vmatpush1.msra.mxu0 0.0
    %608 = vmatprep.subr.mxu0 0.0
    %609 = vmatpush1.msra.mxu0 0.0
    %610 = vmatprep.subr.mxu0 0.0
    %611 = vmatpush1.msra.mxu0 0.0
    %612 = vmatprep.subr.mxu0 0.0
    %613 = vmatpush1.msra.mxu0 0.0
    %614 = vmatprep.subr.mxu0 0.0
    %615 = vmatpush1.msra.mxu0 0.0
    %616 = vmatprep.subr.mxu0 0.0
    %617 = vmatpush1.msra.mxu0 0.0
    %618 = vmatprep.subr.mxu0 0.0
    %619 = vmatpush1.msra.mxu0 0.0
    %620 = vmatprep.subr.mxu0 0.0
    %621 = vmatpush1.msra.mxu0 0.0
    %622 = vmatprep.subr.mxu0 0.0
    %623 = vmatpush1.msra.mxu0 0.0
    %624 = vmatprep.subr.mxu0 0.0
    %625 = vmatpush1.msra.mxu0 0.0
    %626 = vmatprep.subr.mxu0 0.0
    %627 = vmatpush1.msra.mxu0 0.0
    %628 = vmatprep.subr.mxu0 0.0
    %629 = vmatpush1.msra.mxu0 0.0
    %630 = vmatprep.subr.mxu0 0.0
    %631 = vmatpush1.msra.mxu0 0.0
    %632 = vmatprep.subr.mxu0 0.0
    %633 = vmatpush1.msra.mxu0 0.0
    %634 = vmatprep.subr.mxu0 0.0
    %635 = vmatpush1.msra.mxu0 0.0
    %636 = vmatprep.subr.mxu0 0.0
    %637 = vmatpush1.msra.mxu0 0.0
    %638 = vmatprep.mubr.f32.mxu0 0.0
    %639 = vmatmul.mubr.f32.gmra.mrb[0].mxu0 %v563
    %v640 = vpop.f32.mrb[0].mxu0
    %v641 = vadd.f32 0.0, %v640
    %v642 = vpop.f32.mrb[0].mxu0
    %v643 = vadd.f32 0.0, %v642
    %644 = vmatprep.mubr.f32.mxu0 0.0
    %645 = vmatmul.mubr.f32.gmra.mrb[0].mxu0 %v565
    %v646 = vpop.f32.mrb[0].mxu0
    %v647 = vadd.f32 0.0, %v646
    %v648 = vpop.f32.mrb[0].mxu0
    %v649 = vadd.f32 0.0, %v648
    %650 = vmatprep.mubr.f32.mxu0 0.0
    %651 = vmatmul.mubr.f32.gmra.mrb[0].mxu0 %v568
    %v652 = vpop.f32.mrb[0].mxu0
    %v653 = vadd.f32 0.0, %v652
    %v654 = vpop.f32.mrb[0].mxu0
    %v655 = vadd.f32 0.0, %v654
    %656 = vmatprep.mubr.f32.mxu0 0.0
    %657 = vmatmul.mubr.f32.gmra.mrb[0].mxu0 %v570
    %v658 = vpop.f32.mrb[0].mxu0
    %v659 = vadd.f32 0.0, %v658
    %v660 = vpop.f32.mrb[0].mxu0
    %v661 = vadd.f32 0.0, %v660
    %662 = vmatprep.mubr.f32.mxu0 0.0
    %663 = vmatmul.mubr.f32.gmra.mrb[0].mxu0 %v572
    %v664 = vpop.f32.mrb[0].mxu0
    %v665 = vadd.f32 0.0, %v664
    %v666 = vpop.f32.mrb[0].mxu0
    %v667 = vadd.f32 0.0, %v666
    %668 = vdwg.mxu0
    %v669 = vadd.f32 %v501, %v641
    %v670 = vadd.f32 %v503, %v643
    %v671 = vadd.f32 %v507, %v647
    %v672 = vadd.f32 %v509, %v649
    %v673 = vadd.f32 %v513, %v653
    %v674 = vadd.f32 %v515, %v655
    %v675 = vadd.f32 %v519, %v659
    %v676 = vadd.f32 %v521, %v661
    %v677 = vadd.f32 %v525, %v665
    %v678 = vadd.f32 %v527, %v667
    %v679 = vld [vmem:[%s10] sm:$0x7]
    %v680 = vld [vmem:[%s7] sm:$0xff]
    %v681 = vld [vmem:[%s7 + $0x8] sm:$0xff]
    %vm682 = vcmask 64512
    %v684 = vsel %vm682, %v679, 0
    %686 = vmatprep.subr.mxu0 %v681
    %687 = vmatpush1.msra.mxu0 %v680
    %688 = vmatprep.subr.mxu0 0.0
    %689 = vmatpush1.msra.mxu0 0.0
    %690 = vmatprep.subr.mxu0 0.0
    %691 = vmatpush1.msra.mxu0 0.0
    %692 = vmatprep.subr.mxu0 0.0
    %693 = vmatpush1.msra.mxu0 0.0
    %694 = vmatprep.subr.mxu0 0.0
    %695 = vmatpush1.msra.mxu0 0.0
    %696 = vmatprep.subr.mxu0 0.0
    %697 = vmatpush1.msra.mxu0 0.0
    %698 = vmatprep.subr.mxu0 0.0
    %699 = vmatpush1.msra.mxu0 0.0
    %700 = vmatprep.subr.mxu0 0.0
    %701 = vmatpush1.msra.mxu0 0.0
    %702 = vmatprep.subr.mxu0 0.0
    %703 = vmatpush1.msra.mxu0 0.0
    %704 = vmatprep.subr.mxu0 0.0
    %705 = vmatpush1.msra.mxu0 0.0
    %706 = vmatprep.subr.mxu0 0.0
    %707 = vmatpush1.msra.mxu0 0.0
    %708 = vmatprep.subr.mxu0 0.0
    %709 = vmatpush1.msra.mxu0 0.0
    %710 = vmatprep.subr.mxu0 0.0
    %711 = vmatpush1.msra.mxu0 0.0
    %712 = vmatprep.subr.mxu0 0.0
    %713 = vmatpush1.msra.mxu0 0.0
    %714 = vmatprep.subr.mxu0 0.0
    %715 = vmatpush1.msra.mxu0 0.0
    %716 = vmatprep.subr.mxu0 0.0
    %717 = vmatpush1.msra.mxu0 0.0
    %718 = vmatprep.subr.mxu0 0.0
    %719 = vmatpush1.msra.mxu0 0.0
    %720 = vmatprep.subr.mxu0 0.0
    %721 = vmatpush1.msra.mxu0 0.0
    %722 = vmatprep.subr.mxu0 0.0
    %723 = vmatpush1.msra.mxu0 0.0
    %724 = vmatprep.subr.mxu0 0.0
    %725 = vmatpush1.msra.mxu0 0.0
    %726 = vmatprep.subr.mxu0 0.0
    %727 = vmatpush1.msra.mxu0 0.0
    %728 = vmatprep.subr.mxu0 0.0
    %729 = vmatpush1.msra.mxu0 0.0
    %730 = vmatprep.subr.mxu0 0.0
    %731 = vmatpush1.msra.mxu0 0.0
    %732 = vmatprep.subr.mxu0 0.0
    %733 = vmatpush1.msra.mxu0 0.0
    %734 = vmatprep.subr.mxu0 0.0
    %735 = vmatpush1.msra.mxu0 0.0
    %736 = vmatprep.subr.mxu0 0.0
    %737 = vmatpush1.msra.mxu0 0.0
    %738 = vmatprep.subr.mxu0 0.0
    %739 = vmatpush1.msra.mxu0 0.0
    %740 = vmatprep.subr.mxu0 0.0
    %741 = vmatpush1.msra.mxu0 0.0
    %742 = vmatprep.subr.mxu0 0.0
    %743 = vmatpush1.msra.mxu0 0.0
    %744 = vmatprep.subr.mxu0 0.0
    %745 = vmatpush1.msra.mxu0 0.0
    %746 = vmatprep.subr.mxu0 0.0
    %747 = vmatpush1.msra.mxu0 0.0
    %748 = vmatprep.subr.mxu0 0.0
    %749 = vmatpush1.msra.mxu0 0.0
    %750 = vmatprep.mubr.f32.mxu0 0.0
    %751 = vmatmul.mubr.f32.gmra.mrb[0].mxu0 %v684
    %v752 = vpop.f32.mrb[0].mxu0
    %v753 = vadd.f32 0.0, %v752
    %v754 = vpop.f32.mrb[0].mxu0
    %v755 = vadd.f32 0.0, %v754
    %756 = vdwg.mxu0
    %v757 = vlaneseq
    %v758 = vshrl.u32 %v757, 7
    %v759 = vsub.s32 0, %v758
    %v760 = vrot.slane %v753, %v759
    %v761 = vlaneseq
    %v762 = vshrl.u32 %v761, 7
    %v763 = vsub.s32 0, %v762
    %v764 = vrot.slane %v755, %v763
    %v765 = vadd.f32 %v669, %v760
    %v766 = vadd.f32 %v670, %v764
    %v767 = vadd.f32 %v671, %v760
    %v768 = vadd.f32 %v672, %v764
    %v769 = vadd.f32 %v673, %v760
    %v770 = vadd.f32 %v674, %v764
    %v771 = vadd.f32 %v675, %v760
    %v772 = vadd.f32 %v676, %v764
    %v773 = vadd.f32 %v677, %v760
    %v774 = vadd.f32 %v678, %v764
    %v775 = vadd.f32 %v765, %v767
    %v776 = vadd.f32 %v775, %v769
    %v777 = vadd.f32 %v776, %v771
    %v778 = vsel %vm534, %v773, 0.0
    %v779 = vadd.f32 %v777, %v778
    %v780 = vrot.slane %v779, 4
    %v781 = vadd.f32 %v779, %v780
    %v782 = vrot.slane %v781, 2
    %v783 = vadd.f32 %v781, %v782
    %v784 = vrot.slane %v783, 1
    %v785 = vadd.f32 %v783, %v784
    %v786 = vsel %vm140, %v766, 0.0
    %v787 = vsel %vm140, %v768, 0.0
    %v788 = vadd.f32 %v786, %v787
    %v789 = vsel %vm140, %v770, 0.0
    %v790 = vadd.f32 %v788, %v789
    %v791 = vsel %vm140, %v772, 0.0
    %v792 = vadd.f32 %v790, %v791
    %vm793 = vcmask 125952
    %v794 = vsel %vm793, %v774, 0.0
    %v795 = vadd.f32 %v792, %v794
    %v796 = vrot.slane %v795, 4
    %v797 = vadd.f32 %v795, %v796
    %v798 = vrot.slane %v797, 2
    %v799 = vadd.f32 %v797, %v798
    %v800 = vrot.slane %v799, 1
    %v801 = vadd.f32 %v799, %v800
    %v802 = vld [vmem:[%s6] sm:$0xff]
    %v803 = vld [vmem:[%s6 + $0x8] sm:$0xff]
    %v804 = vld [vmem:[%s6 + $0x10] sm:$0xff]
    %v805 = vld [vmem:[%s6 + $0x18] sm:$0xff]
    %v806 = vld [vmem:[%s6 + $0x20] sm:$0xff]
    %v807 = vld [vmem:[%s6 + $0x28] sm:$0xff]
    %v808 = vld [vmem:[%s6 + $0x30] sm:$0xff]
    %v809 = vld [vmem:[%s6 + $0x38] sm:$0xff]
    %v810 = vld [vmem:[%s6 + $0x40] sm:$0xff]
    %v811 = vld [vmem:[%s6 + $0x48] sm:$0xff]
    %v812 = vld [vmem:[%s6 + $0x50] sm:$0xff]
    %v813 = vld [vmem:[%s6 + $0x58] sm:$0xff]
    %v814 = vld [vmem:[%s6 + $0x60] sm:$0xff]
    %v815 = vld [vmem:[%s6 + $0x68] sm:$0xff]
    %v816 = vld [vmem:[%s6 + $0x70] sm:$0xff]
    %v817 = vld [vmem:[%s6 + $0x78] sm:$0xff]
    %v818 = vld [vmem:[%s6 + $0x80] sm:$0xff]
    %v819 = vld [vmem:[%s6 + $0x88] sm:$0xff]
    %v821 = vsel %vm140, %v801, 0
    %823 = vmatprep.subr.mxu0 0.0
    %824 = vmatpush1.msra.mxu0 %v802
    %825 = vmatprep.subr.mxu0 0.0
    %826 = vmatpush1.msra.mxu0 %v803
    %827 = vmatprep.subr.mxu0 0.0
    %828 = vmatpush1.msra.mxu0 %v804
    %829 = vmatprep.subr.mxu0 0.0
    %830 = vmatpush1.msra.mxu0 %v805
    %831 = vmatprep.subr.mxu0 0.0
    %832 = vmatpush1.msra.mxu0 %v806
    %833 = vmatprep.subr.mxu0 0.0
    %834 = vmatpush1.msra.mxu0 %v807
    %835 = vmatprep.subr.mxu0 0.0
    %836 = vmatpush1.msra.mxu0 %v808
    %837 = vmatprep.subr.mxu0 0.0
    %838 = vmatpush1.msra.mxu0 %v809
    %839 = vmatprep.subr.mxu0 0.0
    %840 = vmatpush1.msra.mxu0 %v810
    %841 = vmatprep.subr.mxu0 0.0
    %842 = vmatpush1.msra.mxu0 %v811
    %843 = vmatprep.subr.mxu0 0.0
    %844 = vmatpush1.msra.mxu0 %v812
    %845 = vmatprep.subr.mxu0 0.0
    %846 = vmatpush1.msra.mxu0 %v813
    %847 = vmatprep.subr.mxu0 0.0
    %848 = vmatpush1.msra.mxu0 %v814
    %849 = vmatprep.subr.mxu0 0.0
    %850 = vmatpush1.msra.mxu0 %v815
    %851 = vmatprep.subr.mxu0 0.0
    %852 = vmatpush1.msra.mxu0 %v816
    %853 = vmatprep.subr.mxu0 0.0
    %854 = vmatpush1.msra.mxu0 %v817
    %855 = vmatprep.subr.mxu0 0.0
    %856 = vmatpush1.msra.mxu0 %v818
    %857 = vmatprep.subr.mxu0 0.0
    %858 = vmatpush1.msra.mxu0 %v819
    %859 = vmatprep.subr.mxu0 0.0
    %860 = vmatpush1.msra.mxu0 0.0
    %861 = vmatprep.subr.mxu0 0.0
    %862 = vmatpush1.msra.mxu0 0.0
    %863 = vmatprep.subr.mxu0 0.0
    %864 = vmatpush1.msra.mxu0 0.0
    %865 = vmatprep.subr.mxu0 0.0
    %866 = vmatpush1.msra.mxu0 0.0
    %867 = vmatprep.subr.mxu0 0.0
    %868 = vmatpush1.msra.mxu0 0.0
    %869 = vmatprep.subr.mxu0 0.0
    %870 = vmatpush1.msra.mxu0 0.0
    %871 = vmatprep.subr.mxu0 0.0
    %872 = vmatpush1.msra.mxu0 0.0
    %873 = vmatprep.subr.mxu0 0.0
    %874 = vmatpush1.msra.mxu0 0.0
    %875 = vmatprep.subr.mxu0 0.0
    %876 = vmatpush1.msra.mxu0 0.0
    %877 = vmatprep.subr.mxu0 0.0
    %878 = vmatpush1.msra.mxu0 0.0
    %879 = vmatprep.subr.mxu0 0.0
    %880 = vmatpush1.msra.mxu0 0.0
    %881 = vmatprep.subr.mxu0 0.0
    %882 = vmatpush1.msra.mxu0 0.0
    %883 = vmatprep.subr.mxu0 0.0
    %884 = vmatpush1.msra.mxu0 0.0
    %885 = vmatprep.subr.mxu0 0.0
    %886 = vmatpush1.msra.mxu0 0.0
    %887 = vmatprep.mubr.f32.mxu0 %v821
    %888 = vmatmul.mubr.f32.gmra.mrb[0].mxu0 %v785
    %v889 = vpop.f32.mrb[0].mxu0
    %v890 = vadd.f32 0.0, %v889
    %v891 = vpop.f32.mrb[0].mxu0
    %892 = vdwg.mxu0
    %v893 = vmul.f32 %v765, %v765
    %v894 = vmul.f32 %v766, %v766
    %v895 = vmul.f32 %v767, %v767
    %v896 = vmul.f32 %v768, %v768
    %v897 = vmul.f32 %v769, %v769
    %v898 = vmul.f32 %v770, %v770
    %v899 = vmul.f32 %v771, %v771
    %v900 = vmul.f32 %v772, %v772
    %v901 = vmul.f32 %v773, %v773
    %v902 = vmul.f32 %v774, %v774
    %v903 = vadd.f32 %v893, %v895
    %v904 = vadd.f32 %v903, %v897
    %v905 = vadd.f32 %v904, %v899
    %v906 = vsel %vm534, %v901, 0.0
    %v907 = vadd.f32 %v905, %v906
    %v908 = vrot.slane %v907, 4
    %v909 = vadd.f32 %v907, %v908
    %v910 = vrot.slane %v909, 2
    %v911 = vadd.f32 %v909, %v910
    %v912 = vrot.slane %v911, 1
    %v913 = vadd.f32 %v911, %v912
    %v914 = vsel %vm140, %v894, 0.0
    %v915 = vsel %vm140, %v896, 0.0
    %v916 = vadd.f32 %v914, %v915
    %v917 = vsel %vm140, %v898, 0.0
    %v918 = vadd.f32 %v916, %v917
    %v919 = vsel %vm140, %v900, 0.0
    %v920 = vadd.f32 %v918, %v919
    %v921 = vsel %vm793, %v902, 0.0
    %v922 = vadd.f32 %v920, %v921
    %v923 = vrot.slane %v922, 4
    %v924 = vadd.f32 %v922, %v923
    %v925 = vrot.slane %v924, 2
    %v926 = vadd.f32 %v924, %v925
    %v927 = vrot.slane %v926, 1
    %v928 = vadd.f32 %v926, %v927
    %v930 = vsel %vm140, %v928, 0
    %932 = vmatprep.subr.mxu0 0.0
    %933 = vmatpush1.msra.mxu0 %v802
    %934 = vmatprep.subr.mxu0 0.0
    %935 = vmatpush1.msra.mxu0 %v803
    %936 = vmatprep.subr.mxu0 0.0
    %937 = vmatpush1.msra.mxu0 %v804
    %938 = vmatprep.subr.mxu0 0.0
    %939 = vmatpush1.msra.mxu0 %v805
    %940 = vmatprep.subr.mxu0 0.0
    %941 = vmatpush1.msra.mxu0 %v806
    %942 = vmatprep.subr.mxu0 0.0
    %943 = vmatpush1.msra.mxu0 %v807
    %944 = vmatprep.subr.mxu0 0.0
    %945 = vmatpush1.msra.mxu0 %v808
    %946 = vmatprep.subr.mxu0 0.0
    %947 = vmatpush1.msra.mxu0 %v809
    %948 = vmatprep.subr.mxu0 0.0
    %949 = vmatpush1.msra.mxu0 %v810
    %950 = vmatprep.subr.mxu0 0.0
    %951 = vmatpush1.msra.mxu0 %v811
    %952 = vmatprep.subr.mxu0 0.0
    %953 = vmatpush1.msra.mxu0 %v812
    %954 = vmatprep.subr.mxu0 0.0
    %955 = vmatpush1.msra.mxu0 %v813
    %956 = vmatprep.subr.mxu0 0.0
    %957 = vmatpush1.msra.mxu0 %v814
    %958 = vmatprep.subr.mxu0 0.0
    %959 = vmatpush1.msra.mxu0 %v815
    %960 = vmatprep.subr.mxu0 0.0
    %961 = vmatpush1.msra.mxu0 %v816
    %962 = vmatprep.subr.mxu0 0.0
    %963 = vmatpush1.msra.mxu0 %v817
    %964 = vmatprep.subr.mxu0 0.0
    %965 = vmatpush1.msra.mxu0 %v818
    %966 = vmatprep.subr.mxu0 0.0
    %967 = vmatpush1.msra.mxu0 %v819
    %968 = vmatprep.subr.mxu0 0.0
    %969 = vmatpush1.msra.mxu0 0.0
    %970 = vmatprep.subr.mxu0 0.0
    %971 = vmatpush1.msra.mxu0 0.0
    %972 = vmatprep.subr.mxu0 0.0
    %973 = vmatpush1.msra.mxu0 0.0
    %974 = vmatprep.subr.mxu0 0.0
    %975 = vmatpush1.msra.mxu0 0.0
    %976 = vmatprep.subr.mxu0 0.0
    %977 = vmatpush1.msra.mxu0 0.0
    %978 = vmatprep.subr.mxu0 0.0
    %979 = vmatpush1.msra.mxu0 0.0
    %980 = vmatprep.subr.mxu0 0.0
    %981 = vmatpush1.msra.mxu0 0.0
    %982 = vmatprep.subr.mxu0 0.0
    %983 = vmatpush1.msra.mxu0 0.0
    %984 = vmatprep.subr.mxu0 0.0
    %985 = vmatpush1.msra.mxu0 0.0
    %986 = vmatprep.subr.mxu0 0.0
    %987 = vmatpush1.msra.mxu0 0.0
    %988 = vmatprep.subr.mxu0 0.0
    %989 = vmatpush1.msra.mxu0 0.0
    %990 = vmatprep.subr.mxu0 0.0
    %991 = vmatpush1.msra.mxu0 0.0
    %992 = vmatprep.subr.mxu0 0.0
    %993 = vmatpush1.msra.mxu0 0.0
    %994 = vmatprep.subr.mxu0 0.0
    %995 = vmatpush1.msra.mxu0 0.0
    %996 = vmatprep.mubr.f32.mxu0 %v930
    %997 = vmatmul.mubr.f32.gmra.mrb[0].mxu0 %v913
    %v998 = vpop.f32.mrb[0].mxu0
    %v999 = vadd.f32 0.0, %v998
    %v1000 = vpop.f32.mrb[0].mxu0
    %1001 = vdwg.mxu0
    %v1002 = vmul.f32 %v890, 0.0015432099
    %v1003 = vmul.f32 %v999, 0.0015432099
    %v1004 = vmul.f32 %v1002, %v1002
    %v1005 = vsub.f32 %v1003, %v1004
    %v1006 = vmax.f32 %v1005, 0.0
    %v1007 = vadd.f32 %v1006, 1e-05
    %v1008 = vrsqrt.pop %v1007
    %v1010 = vrot.slane %v1008, 7
    %v1012 = vmul.f32 %v679, %v1010
    %v1014 = vrot.slane %v1012, 1
    %v1016 = vmul.f32 %v1002, %v1014
    %v1018 = vrot.slane %v1016, 6
    %v1020 = vsub.f32 %v679, %v1018
    %v1021 = vsel %vm682, %v1014, 0
    %1023 = vmatprep.subr.mxu0 %v681
    %1024 = vmatpush1.msra.mxu0 %v680
    %1025 = vmatprep.subr.mxu0 0.0
    %1026 = vmatpush1.msra.mxu0 0.0
    %1027 = vmatprep.subr.mxu0 0.0
    %1028 = vmatpush1.msra.mxu0 0.0
    %1029 = vmatprep.subr.mxu0 0.0
    %1030 = vmatpush1.msra.mxu0 0.0
    %1031 = vmatprep.subr.mxu0 0.0
    %1032 = vmatpush1.msra.mxu0 0.0
    %1033 = vmatprep.subr.mxu0 0.0
    %1034 = vmatpush1.msra.mxu0 0.0
    %1035 = vmatprep.subr.mxu0 0.0
    %1036 = vmatpush1.msra.mxu0 0.0
    %1037 = vmatprep.subr.mxu0 0.0
    %1038 = vmatpush1.msra.mxu0 0.0
    %1039 = vmatprep.subr.mxu0 0.0
    %1040 = vmatpush1.msra.mxu0 0.0
    %1041 = vmatprep.subr.mxu0 0.0
    %1042 = vmatpush1.msra.mxu0 0.0
    %1043 = vmatprep.subr.mxu0 0.0
    %1044 = vmatpush1.msra.mxu0 0.0
    %1045 = vmatprep.subr.mxu0 0.0
    %1046 = vmatpush1.msra.mxu0 0.0
    %1047 = vmatprep.subr.mxu0 0.0
    %1048 = vmatpush1.msra.mxu0 0.0
    %1049 = vmatprep.subr.mxu0 0.0
    %1050 = vmatpush1.msra.mxu0 0.0
    %1051 = vmatprep.subr.mxu0 0.0
    %1052 = vmatpush1.msra.mxu0 0.0
    %1053 = vmatprep.subr.mxu0 0.0
    %1054 = vmatpush1.msra.mxu0 0.0
    %1055 = vmatprep.subr.mxu0 0.0
    %1056 = vmatpush1.msra.mxu0 0.0
    %1057 = vmatprep.subr.mxu0 0.0
    %1058 = vmatpush1.msra.mxu0 0.0
    %1059 = vmatprep.subr.mxu0 0.0
    %1060 = vmatpush1.msra.mxu0 0.0
    %1061 = vmatprep.subr.mxu0 0.0
    %1062 = vmatpush1.msra.mxu0 0.0
    %1063 = vmatprep.subr.mxu0 0.0
    %1064 = vmatpush1.msra.mxu0 0.0
    %1065 = vmatprep.subr.mxu0 0.0
    %1066 = vmatpush1.msra.mxu0 0.0
    %1067 = vmatprep.subr.mxu0 0.0
    %1068 = vmatpush1.msra.mxu0 0.0
    %1069 = vmatprep.subr.mxu0 0.0
    %1070 = vmatpush1.msra.mxu0 0.0
    %1071 = vmatprep.subr.mxu0 0.0
    %1072 = vmatpush1.msra.mxu0 0.0
    %1073 = vmatprep.subr.mxu0 0.0
    %1074 = vmatpush1.msra.mxu0 0.0
    %1075 = vmatprep.subr.mxu0 0.0
    %1076 = vmatpush1.msra.mxu0 0.0
    %1077 = vmatprep.subr.mxu0 0.0
    %1078 = vmatpush1.msra.mxu0 0.0
    %1079 = vmatprep.subr.mxu0 0.0
    %1080 = vmatpush1.msra.mxu0 0.0
    %1081 = vmatprep.subr.mxu0 0.0
    %1082 = vmatpush1.msra.mxu0 0.0
    %1083 = vmatprep.subr.mxu0 0.0
    %1084 = vmatpush1.msra.mxu0 0.0
    %1085 = vmatprep.subr.mxu0 0.0
    %1086 = vmatpush1.msra.mxu0 0.0
    %1087 = vmatprep.mubr.f32.mxu0 0.0
    %1088 = vmatmul.mubr.f32.gmra.mrb[0].mxu0 %v1021
    %v1089 = vpop.f32.mrb[0].mxu0
    %v1090 = vadd.f32 0.0, %v1089
    %v1091 = vpop.f32.mrb[0].mxu0
    %v1092 = vadd.f32 0.0, %v1091
    %1093 = vdwg.mxu0
    %v1094 = vlaneseq
    %v1095 = vshrl.u32 %v1094, 7
    %v1096 = vsub.s32 0, %v1095
    %v1097 = vrot.slane %v1090, %v1096
    %v1098 = vlaneseq
    %v1099 = vshrl.u32 %v1098, 7
    %v1100 = vsub.s32 0, %v1099
    %v1101 = vrot.slane %v1092, %v1100
    %v1102 = vmul.f32 %v765, %v1097
    %v1103 = vmul.f32 %v766, %v1101
    %v1104 = vmul.f32 %v767, %v1097
    %v1105 = vmul.f32 %v768, %v1101
    %v1106 = vmul.f32 %v769, %v1097
    %v1107 = vmul.f32 %v770, %v1101
    %v1108 = vmul.f32 %v771, %v1097
    %v1109 = vmul.f32 %v772, %v1101
    %v1110 = vmul.f32 %v773, %v1097
    %v1111 = vmul.f32 %v774, %v1101
    %v1113 = vrot.slane %v1020, 2
    %v1114 = vsel %vm682, %v1113, 0
    %1116 = vmatprep.subr.mxu0 %v681
    %1117 = vmatpush1.msra.mxu0 %v680
    %1118 = vmatprep.subr.mxu0 0.0
    %1119 = vmatpush1.msra.mxu0 0.0
    %1120 = vmatprep.subr.mxu0 0.0
    %1121 = vmatpush1.msra.mxu0 0.0
    %1122 = vmatprep.subr.mxu0 0.0
    %1123 = vmatpush1.msra.mxu0 0.0
    %1124 = vmatprep.subr.mxu0 0.0
    %1125 = vmatpush1.msra.mxu0 0.0
    %1126 = vmatprep.subr.mxu0 0.0
    %1127 = vmatpush1.msra.mxu0 0.0
    %1128 = vmatprep.subr.mxu0 0.0
    %1129 = vmatpush1.msra.mxu0 0.0
    %1130 = vmatprep.subr.mxu0 0.0
    %1131 = vmatpush1.msra.mxu0 0.0
    %1132 = vmatprep.subr.mxu0 0.0
    %1133 = vmatpush1.msra.mxu0 0.0
    %1134 = vmatprep.subr.mxu0 0.0
    %1135 = vmatpush1.msra.mxu0 0.0
    %1136 = vmatprep.subr.mxu0 0.0
    %1137 = vmatpush1.msra.mxu0 0.0
    %1138 = vmatprep.subr.mxu0 0.0
    %1139 = vmatpush1.msra.mxu0 0.0
    %1140 = vmatprep.subr.mxu0 0.0
    %1141 = vmatpush1.msra.mxu0 0.0
    %1142 = vmatprep.subr.mxu0 0.0
    %1143 = vmatpush1.msra.mxu0 0.0
    %1144 = vmatprep.subr.mxu0 0.0
    %1145 = vmatpush1.msra.mxu0 0.0
    %1146 = vmatprep.subr.mxu0 0.0
    %1147 = vmatpush1.msra.mxu0 0.0
    %1148 = vmatprep.subr.mxu0 0.0
    %1149 = vmatpush1.msra.mxu0 0.0
    %1150 = vmatprep.subr.mxu0 0.0
    %1151 = vmatpush1.msra.mxu0 0.0
    %1152 = vmatprep.subr.mxu0 0.0
    %1153 = vmatpush1.msra.mxu0 0.0
    %1154 = vmatprep.subr.mxu0 0.0
    %1155 = vmatpush1.msra.mxu0 0.0
    %1156 = vmatprep.subr.mxu0 0.0
    %1157 = vmatpush1.msra.mxu0 0.0
    %1158 = vmatprep.subr.mxu0 0.0
    %1159 = vmatpush1.msra.mxu0 0.0
    %1160 = vmatprep.subr.mxu0 0.0
    %1161 = vmatpush1.msra.mxu0 0.0
    %1162 = vmatprep.subr.mxu0 0.0
    %1163 = vmatpush1.msra.mxu0 0.0
    %1164 = vmatprep.subr.mxu0 0.0
    %1165 = vmatpush1.msra.mxu0 0.0
    %1166 = vmatprep.subr.mxu0 0.0
    %1167 = vmatpush1.msra.mxu0 0.0
    %1168 = vmatprep.subr.mxu0 0.0
    %1169 = vmatpush1.msra.mxu0 0.0
    %1170 = vmatprep.subr.mxu0 0.0
    %1171 = vmatpush1.msra.mxu0 0.0
    %1172 = vmatprep.subr.mxu0 0.0
    %1173 = vmatpush1.msra.mxu0 0.0
    %1174 = vmatprep.subr.mxu0 0.0
    %1175 = vmatpush1.msra.mxu0 0.0
    %1176 = vmatprep.subr.mxu0 0.0
    %1177 = vmatpush1.msra.mxu0 0.0
    %1178 = vmatprep.subr.mxu0 0.0
    %1179 = vmatpush1.msra.mxu0 0.0
    %1180 = vmatprep.mubr.f32.mxu0 0.0
    %1181 = vmatmul.mubr.f32.gmra.mrb[0].mxu0 %v1114
    %v1182 = vpop.f32.mrb[0].mxu0
    %v1183 = vadd.f32 0.0, %v1182
    %v1184 = vpop.f32.mrb[0].mxu0
    %v1185 = vadd.f32 0.0, %v1184
    %1186 = vdwg.mxu0
    %v1187 = vlaneseq
    %v1188 = vshrl.u32 %v1187, 7
    %v1189 = vsub.s32 0, %v1188
    %v1190 = vrot.slane %v1183, %v1189
    %v1191 = vlaneseq
    %v1192 = vshrl.u32 %v1191, 7
    %v1193 = vsub.s32 0, %v1192
    %v1194 = vrot.slane %v1185, %v1193
    %v1195 = vadd.f32 %v1102, %v1190
    %v1196 = vadd.f32 %v1103, %v1194
    %v1197 = vadd.f32 %v1104, %v1190
    %v1198 = vadd.f32 %v1105, %v1194
    %v1199 = vadd.f32 %v1106, %v1190
    %v1200 = vadd.f32 %v1107, %v1194
    %v1201 = vadd.f32 %v1108, %v1190
    %v1202 = vadd.f32 %v1109, %v1194
    %v1203 = vadd.f32 %v1110, %v1190
    %v1204 = vadd.f32 %v1111, %v1194
    %v1205 = vmax.f32 %v1195, 0.0
    %v1206 = vmax.f32 %v1196, 0.0
    %v1207 = vmax.f32 %v1197, 0.0
    %v1208 = vmax.f32 %v1198, 0.0
    %v1209 = vmax.f32 %v1199, 0.0
    %v1210 = vmax.f32 %v1200, 0.0
    %v1211 = vmax.f32 %v1201, 0.0
    %v1212 = vmax.f32 %v1202, 0.0
    %v1213 = vmax.f32 %v1203, 0.0
    %v1214 = vmax.f32 %v1204, 0.0
    %v1221 = vrot.slane %v1209, 2
    %v1222 = vrot.slane %v1211, 2
    %v1223 = vsel %vm249, %v1221, %v1222
    %v1224 = vrot.slane %v1210, 2
    %v1225 = vrot.slane %v1212, 2
    %v1226 = vsel %vm249, %v1224, %v1225
    %v1227 = vrot.slane %v1213, 2
    %v1228 = vsel %vm249, %v1222, %v1227
    %v1229 = vrot.slane %v1214, 2
    %v1230 = vsel %vm249, %v1225, %v1229
    %v1233 = vld [vmem:[%s5] sm:$0xff]
    %v1234 = vld [vmem:[%s5 + $0x8] sm:$0xff]
    %v1235 = vld [vmem:[%s5 + $0x10] sm:$0xff]
    %v1236 = vld [vmem:[%s5 + $0x18] sm:$0xff]
    %v1237 = vld [vmem:[%s5 + $0x20] sm:$0xff]
    %v1238 = vld [vmem:[%s5 + $0x28] sm:$0xff]
    %v1239 = vld [vmem:[%s5 + $0x30] sm:$0xff]
    %v1240 = vld [vmem:[%s5 + $0x38] sm:$0xff]
    %v1241 = vld [vmem:[%s5 + $0x40] sm:$0xff]
    %v1242 = vld [vmem:[%s5 + $0x48] sm:$0xff]
    %v1243 = vld [vmem:[%s5 + $0x50] sm:$0xff]
    %v1244 = vld [vmem:[%s5 + $0x58] sm:$0xff]
    %v1245 = vld [vmem:[%s5 + $0x60] sm:$0xff]
    %v1246 = vld [vmem:[%s5 + $0x68] sm:$0xff]
    %v1247 = vld [vmem:[%s5 + $0x70] sm:$0xff]
    %v1248 = vld [vmem:[%s5 + $0x78] sm:$0xff]
    %v1249 = vld [vmem:[%s5 + $0x80] sm:$0xff]
    %v1250 = vld [vmem:[%s5 + $0x88] sm:$0xff]
    %v1255 = vrot.slane %v1205, 1
    %v1256 = vrot.slane %v1207, 1
    %v1257 = vsel %vm280, %v1255, %v1256
    %v1258 = vrot.slane %v1206, 1
    %v1259 = vrot.slane %v1208, 1
    %v1260 = vsel %vm280, %v1258, %v1259
    %v1261 = vrot.slane %v1209, 1
    %v1262 = vsel %vm280, %v1256, %v1261
    %v1263 = vrot.slane %v1210, 1
    %v1264 = vsel %vm280, %v1259, %v1263
    %v1267 = vrot.slane %v1209, 3
    %v1268 = vrot.slane %v1211, 3
    %v1269 = vsel %vm287, %v1267, %v1268
    %v1270 = vrot.slane %v1210, 3
    %v1271 = vrot.slane %v1212, 3
    %v1272 = vsel %vm287, %v1270, %v1271
    %v1273 = vrot.slane %v1213, 3
    %v1274 = vsel %vm287, %v1268, %v1273
    %v1275 = vrot.slane %v1214, 3
    %v1276 = vsel %vm287, %v1271, %v1275
    %s1279 = scalar_lea.vmem %s5, 144
    %v1280 = vld [vmem:[%s1279] sm:$0xff]
    %v1281 = vld [vmem:[%s1279 + $0x8] sm:$0xff]
    %v1282 = vld [vmem:[%s1279 + $0x10] sm:$0xff]
    %v1283 = vld [vmem:[%s1279 + $0x18] sm:$0xff]
    %v1284 = vld [vmem:[%s1279 + $0x20] sm:$0xff]
    %v1285 = vld [vmem:[%s1279 + $0x28] sm:$0xff]
    %v1286 = vld [vmem:[%s1279 + $0x30] sm:$0xff]
    %v1287 = vld [vmem:[%s1279 + $0x38] sm:$0xff]
    %v1288 = vld [vmem:[%s1279 + $0x40] sm:$0xff]
    %v1289 = vld [vmem:[%s1279 + $0x48] sm:$0xff]
    %v1290 = vld [vmem:[%s1279 + $0x50] sm:$0xff]
    %v1291 = vld [vmem:[%s1279 + $0x58] sm:$0xff]
    %v1292 = vld [vmem:[%s1279 + $0x60] sm:$0xff]
    %v1293 = vld [vmem:[%s1279 + $0x68] sm:$0xff]
    %v1294 = vld [vmem:[%s1279 + $0x70] sm:$0xff]
    %v1295 = vld [vmem:[%s1279 + $0x78] sm:$0xff]
    %v1296 = vld [vmem:[%s1279 + $0x80] sm:$0xff]
    %v1297 = vld [vmem:[%s1279 + $0x88] sm:$0xff]
    %v1298 = vsel %vm140, %v1260, 0
    %v1300 = vsel %vm140, %v1264, 0
    %v1302 = vsel %vm140, %v1272, 0
    %v1304 = vsel %vm140, %v1276, 0
    %1306 = vmatprep.subr.mxu0 0.0
    %1307 = vmatpush1.msra.mxu0 %v1280
    %1308 = vmatprep.subr.mxu0 0.0
    %1309 = vmatpush1.msra.mxu0 %v1281
    %1310 = vmatprep.subr.mxu0 0.0
    %1311 = vmatpush1.msra.mxu0 %v1282
    %1312 = vmatprep.subr.mxu0 0.0
    %1313 = vmatpush1.msra.mxu0 %v1283
    %1314 = vmatprep.subr.mxu0 0.0
    %1315 = vmatpush1.msra.mxu0 %v1284
    %1316 = vmatprep.subr.mxu0 0.0
    %1317 = vmatpush1.msra.mxu0 %v1285
    %1318 = vmatprep.subr.mxu0 0.0
    %1319 = vmatpush1.msra.mxu0 %v1286
    %1320 = vmatprep.subr.mxu0 0.0
    %1321 = vmatpush1.msra.mxu0 %v1287
    %1322 = vmatprep.subr.mxu0 0.0
    %1323 = vmatpush1.msra.mxu0 %v1288
    %1324 = vmatprep.subr.mxu0 0.0
    %1325 = vmatpush1.msra.mxu0 %v1289
    %1326 = vmatprep.subr.mxu0 0.0
    %1327 = vmatpush1.msra.mxu0 %v1290
    %1328 = vmatprep.subr.mxu0 0.0
    %1329 = vmatpush1.msra.mxu0 %v1291
    %1330 = vmatprep.subr.mxu0 0.0
    %1331 = vmatpush1.msra.mxu0 %v1292
    %1332 = vmatprep.subr.mxu0 0.0
    %1333 = vmatpush1.msra.mxu0 %v1293
    %1334 = vmatprep.subr.mxu0 0.0
    %1335 = vmatpush1.msra.mxu0 %v1294
    %1336 = vmatprep.subr.mxu0 0.0
    %1337 = vmatpush1.msra.mxu0 %v1295
    %1338 = vmatprep.subr.mxu0 0.0
    %1339 = vmatpush1.msra.mxu0 %v1296
    %1340 = vmatprep.subr.mxu0 0.0
    %1341 = vmatpush1.msra.mxu0 %v1297
    %1342 = vmatprep.subr.mxu0 0.0
    %1343 = vmatpush1.msra.mxu0 0.0
    %1344 = vmatprep.subr.mxu0 0.0
    %1345 = vmatpush1.msra.mxu0 0.0
    %1346 = vmatprep.subr.mxu0 0.0
    %1347 = vmatpush1.msra.mxu0 0.0
    %1348 = vmatprep.subr.mxu0 0.0
    %1349 = vmatpush1.msra.mxu0 0.0
    %1350 = vmatprep.subr.mxu0 0.0
    %1351 = vmatpush1.msra.mxu0 0.0
    %1352 = vmatprep.subr.mxu0 0.0
    %1353 = vmatpush1.msra.mxu0 0.0
    %1354 = vmatprep.subr.mxu0 0.0
    %1355 = vmatpush1.msra.mxu0 0.0
    %1356 = vmatprep.subr.mxu0 0.0
    %1357 = vmatpush1.msra.mxu0 0.0
    %1358 = vmatprep.subr.mxu0 0.0
    %1359 = vmatpush1.msra.mxu0 0.0
    %1360 = vmatprep.subr.mxu0 0.0
    %1361 = vmatpush1.msra.mxu0 0.0
    %1362 = vmatprep.subr.mxu0 0.0
    %1363 = vmatpush1.msra.mxu0 0.0
    %1364 = vmatprep.subr.mxu0 0.0
    %1365 = vmatpush1.msra.mxu0 0.0
    %1366 = vmatprep.subr.mxu0 0.0
    %1367 = vmatpush1.msra.mxu0 0.0
    %1368 = vmatprep.subr.mxu0 0.0
    %1369 = vmatpush1.msra.mxu0 0.0
    %1370 = vmatprep.mubr.f32.mxu0 %v1298
    %1371 = vmatmul.mubr.f32.gmra.mrb[0].mxu0 %v1257
    %v1372 = vpop.f32.mrb[0].mxu0
    %v1373 = vadd.f32 0.0, %v1372
    %v1374 = vpop.f32.mrb[0].mxu0
    %1375 = vmatprep.mubr.f32.mxu0 %v1300
    %1376 = vmatmul.mubr.f32.gmra.mrb[0].mxu0 %v1262
    %v1377 = vpop.f32.mrb[0].mxu0
    %v1378 = vadd.f32 0.0, %v1377
    %v1379 = vpop.f32.mrb[0].mxu0
    %1380 = vmatprep.mubr.f32.mxu0 %v1302
    %1381 = vmatmul.mubr.f32.gmra.mrb[0].mxu0 %v1269
    %v1382 = vpop.f32.mrb[0].mxu0
    %v1383 = vadd.f32 0.0, %v1382
    %v1384 = vpop.f32.mrb[0].mxu0
    %1385 = vmatprep.mubr.f32.mxu0 %v1304
    %1386 = vmatmul.mubr.f32.gmra.mrb[0].mxu0 %v1274
    %v1387 = vpop.f32.mrb[0].mxu0
    %v1388 = vadd.f32 0.0, %v1387
    %v1389 = vpop.f32.mrb[0].mxu0
    %1390 = vdwg.mxu0
    %v1391 = vsel %vm140, %v1206, 0
    %v1393 = vsel %vm140, %v1208, 0
    %v1395 = vsel %vm140, %v1226, 0
    %v1397 = vsel %vm140, %v1230, 0
    %1399 = vmatprep.subr.mxu0 0.0
    %1400 = vmatpush1.msra.mxu0 %v1233
    %1401 = vmatprep.subr.mxu0 0.0
    %1402 = vmatpush1.msra.mxu0 %v1234
    %1403 = vmatprep.subr.mxu0 0.0
    %1404 = vmatpush1.msra.mxu0 %v1235
    %1405 = vmatprep.subr.mxu0 0.0
    %1406 = vmatpush1.msra.mxu0 %v1236
    %1407 = vmatprep.subr.mxu0 0.0
    %1408 = vmatpush1.msra.mxu0 %v1237
    %1409 = vmatprep.subr.mxu0 0.0
    %1410 = vmatpush1.msra.mxu0 %v1238
    %1411 = vmatprep.subr.mxu0 0.0
    %1412 = vmatpush1.msra.mxu0 %v1239
    %1413 = vmatprep.subr.mxu0 0.0
    %1414 = vmatpush1.msra.mxu0 %v1240
    %1415 = vmatprep.subr.mxu0 0.0
    %1416 = vmatpush1.msra.mxu0 %v1241
    %1417 = vmatprep.subr.mxu0 0.0
    %1418 = vmatpush1.msra.mxu0 %v1242
    %1419 = vmatprep.subr.mxu0 0.0
    %1420 = vmatpush1.msra.mxu0 %v1243
    %1421 = vmatprep.subr.mxu0 0.0
    %1422 = vmatpush1.msra.mxu0 %v1244
    %1423 = vmatprep.subr.mxu0 0.0
    %1424 = vmatpush1.msra.mxu0 %v1245
    %1425 = vmatprep.subr.mxu0 0.0
    %1426 = vmatpush1.msra.mxu0 %v1246
    %1427 = vmatprep.subr.mxu0 0.0
    %1428 = vmatpush1.msra.mxu0 %v1247
    %1429 = vmatprep.subr.mxu0 0.0
    %1430 = vmatpush1.msra.mxu0 %v1248
    %1431 = vmatprep.subr.mxu0 0.0
    %1432 = vmatpush1.msra.mxu0 %v1249
    %1433 = vmatprep.subr.mxu0 0.0
    %1434 = vmatpush1.msra.mxu0 %v1250
    %1435 = vmatprep.subr.mxu0 0.0
    %1436 = vmatpush1.msra.mxu0 0.0
    %1437 = vmatprep.subr.mxu0 0.0
    %1438 = vmatpush1.msra.mxu0 0.0
    %1439 = vmatprep.subr.mxu0 0.0
    %1440 = vmatpush1.msra.mxu0 0.0
    %1441 = vmatprep.subr.mxu0 0.0
    %1442 = vmatpush1.msra.mxu0 0.0
    %1443 = vmatprep.subr.mxu0 0.0
    %1444 = vmatpush1.msra.mxu0 0.0
    %1445 = vmatprep.subr.mxu0 0.0
    %1446 = vmatpush1.msra.mxu0 0.0
    %1447 = vmatprep.subr.mxu0 0.0
    %1448 = vmatpush1.msra.mxu0 0.0
    %1449 = vmatprep.subr.mxu0 0.0
    %1450 = vmatpush1.msra.mxu0 0.0
    %1451 = vmatprep.subr.mxu0 0.0
    %1452 = vmatpush1.msra.mxu0 0.0
    %1453 = vmatprep.subr.mxu0 0.0
    %1454 = vmatpush1.msra.mxu0 0.0
    %1455 = vmatprep.subr.mxu0 0.0
    %1456 = vmatpush1.msra.mxu0 0.0
    %1457 = vmatprep.subr.mxu0 0.0
    %1458 = vmatpush1.msra.mxu0 0.0
    %1459 = vmatprep.subr.mxu0 0.0
    %1460 = vmatpush1.msra.mxu0 0.0
    %1461 = vmatprep.subr.mxu0 0.0
    %1462 = vmatpush1.msra.mxu0 0.0
    %1463 = vmatprep.mubr.f32.mxu0 %v1391
    %1464 = vmatmul.mubr.f32.gmra.mrb[0].mxu0 %v1205
    %v1465 = vpop.f32.mrb[0].mxu0
    %v1466 = vadd.f32 %v1373, %v1465
    %v1467 = vpop.f32.mrb[0].mxu0
    %1468 = vmatprep.mubr.f32.mxu0 %v1393
    %1469 = vmatmul.mubr.f32.gmra.mrb[0].mxu0 %v1207
    %v1470 = vpop.f32.mrb[0].mxu0
    %v1471 = vadd.f32 %v1378, %v1470
    %v1472 = vpop.f32.mrb[0].mxu0
    %1473 = vmatprep.mubr.f32.mxu0 %v1395
    %1474 = vmatmul.mubr.f32.gmra.mrb[0].mxu0 %v1223
    %v1475 = vpop.f32.mrb[0].mxu0
    %v1476 = vadd.f32 %v1383, %v1475
    %v1477 = vpop.f32.mrb[0].mxu0
    %1478 = vmatprep.mubr.f32.mxu0 %v1397
    %1479 = vmatmul.mubr.f32.gmra.mrb[0].mxu0 %v1228
    %v1480 = vpop.f32.mrb[0].mxu0
    %v1481 = vadd.f32 %v1388, %v1480
    %v1482 = vpop.f32.mrb[0].mxu0
    %1483 = vdwg.mxu0
    %v1484 = vrot.slane %v1205, 2
    %v1485 = vrot.slane %v1207, 2
    %v1486 = vsel %vm249, %v1484, %v1485
    %v1487 = vrot.slane %v1206, 2
    %v1488 = vrot.slane %v1208, 2
    %v1489 = vsel %vm249, %v1487, %v1488
    %v1490 = vsel %vm249, %v1485, %v1221
    %v1491 = vsel %vm249, %v1488, %v1224
    %v1494 = vrot.slane %v1209, 4
    %v1495 = vrot.slane %v1211, 4
    %v1496 = vsel %vm534, %v1494, %v1495
    %v1497 = vrot.slane %v1210, 4
    %v1498 = vrot.slane %v1212, 4
    %v1499 = vsel %vm534, %v1497, %v1498
    %v1500 = vrot.slane %v1213, 4
    %v1501 = vsel %vm534, %v1495, %v1500
    %v1502 = vrot.slane %v1214, 4
    %v1503 = vsel %vm534, %v1498, %v1502
    %s1506 = scalar_lea.vmem %s5, 288
    %v1507 = vld [vmem:[%s1506] sm:$0xff]
    %v1508 = vld [vmem:[%s1506 + $0x8] sm:$0xff]
    %v1509 = vld [vmem:[%s1506 + $0x10] sm:$0xff]
    %v1510 = vld [vmem:[%s1506 + $0x18] sm:$0xff]
    %v1511 = vld [vmem:[%s1506 + $0x20] sm:$0xff]
    %v1512 = vld [vmem:[%s1506 + $0x28] sm:$0xff]
    %v1513 = vld [vmem:[%s1506 + $0x30] sm:$0xff]
    %v1514 = vld [vmem:[%s1506 + $0x38] sm:$0xff]
    %v1515 = vld [vmem:[%s1506 + $0x40] sm:$0xff]
    %v1516 = vld [vmem:[%s1506 + $0x48] sm:$0xff]
    %v1517 = vld [vmem:[%s1506 + $0x50] sm:$0xff]
    %v1518 = vld [vmem:[%s1506 + $0x58] sm:$0xff]
    %v1519 = vld [vmem:[%s1506 + $0x60] sm:$0xff]
    %v1520 = vld [vmem:[%s1506 + $0x68] sm:$0xff]
    %v1521 = vld [vmem:[%s1506 + $0x70] sm:$0xff]
    %v1522 = vld [vmem:[%s1506 + $0x78] sm:$0xff]
    %v1523 = vld [vmem:[%s1506 + $0x80] sm:$0xff]
    %v1524 = vld [vmem:[%s1506 + $0x88] sm:$0xff]
    %v1525 = vsel %vm140, %v1489, 0
    %v1527 = vsel %vm140, %v1491, 0
    %v1529 = vsel %vm140, %v1499, 0
    %v1531 = vsel %vm140, %v1503, 0
    %1533 = vmatprep.subr.mxu0 0.0
    %1534 = vmatpush1.msra.mxu0 %v1507
    %1535 = vmatprep.subr.mxu0 0.0
    %1536 = vmatpush1.msra.mxu0 %v1508
    %1537 = vmatprep.subr.mxu0 0.0
    %1538 = vmatpush1.msra.mxu0 %v1509
    %1539 = vmatprep.subr.mxu0 0.0
    %1540 = vmatpush1.msra.mxu0 %v1510
    %1541 = vmatprep.subr.mxu0 0.0
    %1542 = vmatpush1.msra.mxu0 %v1511
    %1543 = vmatprep.subr.mxu0 0.0
    %1544 = vmatpush1.msra.mxu0 %v1512
    %1545 = vmatprep.subr.mxu0 0.0
    %1546 = vmatpush1.msra.mxu0 %v1513
    %1547 = vmatprep.subr.mxu0 0.0
    %1548 = vmatpush1.msra.mxu0 %v1514
    %1549 = vmatprep.subr.mxu0 0.0
    %1550 = vmatpush1.msra.mxu0 %v1515
    %1551 = vmatprep.subr.mxu0 0.0
    %1552 = vmatpush1.msra.mxu0 %v1516
    %1553 = vmatprep.subr.mxu0 0.0
    %1554 = vmatpush1.msra.mxu0 %v1517
    %1555 = vmatprep.subr.mxu0 0.0
    %1556 = vmatpush1.msra.mxu0 %v1518
    %1557 = vmatprep.subr.mxu0 0.0
    %1558 = vmatpush1.msra.mxu0 %v1519
    %1559 = vmatprep.subr.mxu0 0.0
    %1560 = vmatpush1.msra.mxu0 %v1520
    %1561 = vmatprep.subr.mxu0 0.0
    %1562 = vmatpush1.msra.mxu0 %v1521
    %1563 = vmatprep.subr.mxu0 0.0
    %1564 = vmatpush1.msra.mxu0 %v1522
    %1565 = vmatprep.subr.mxu0 0.0
    %1566 = vmatpush1.msra.mxu0 %v1523
    %1567 = vmatprep.subr.mxu0 0.0
    %1568 = vmatpush1.msra.mxu0 %v1524
    %1569 = vmatprep.subr.mxu0 0.0
    %1570 = vmatpush1.msra.mxu0 0.0
    %1571 = vmatprep.subr.mxu0 0.0
    %1572 = vmatpush1.msra.mxu0 0.0
    %1573 = vmatprep.subr.mxu0 0.0
    %1574 = vmatpush1.msra.mxu0 0.0
    %1575 = vmatprep.subr.mxu0 0.0
    %1576 = vmatpush1.msra.mxu0 0.0
    %1577 = vmatprep.subr.mxu0 0.0
    %1578 = vmatpush1.msra.mxu0 0.0
    %1579 = vmatprep.subr.mxu0 0.0
    %1580 = vmatpush1.msra.mxu0 0.0
    %1581 = vmatprep.subr.mxu0 0.0
    %1582 = vmatpush1.msra.mxu0 0.0
    %1583 = vmatprep.subr.mxu0 0.0
    %1584 = vmatpush1.msra.mxu0 0.0
    %1585 = vmatprep.subr.mxu0 0.0
    %1586 = vmatpush1.msra.mxu0 0.0
    %1587 = vmatprep.subr.mxu0 0.0
    %1588 = vmatpush1.msra.mxu0 0.0
    %1589 = vmatprep.subr.mxu0 0.0
    %1590 = vmatpush1.msra.mxu0 0.0
    %1591 = vmatprep.subr.mxu0 0.0
    %1592 = vmatpush1.msra.mxu0 0.0
    %1593 = vmatprep.subr.mxu0 0.0
    %1594 = vmatpush1.msra.mxu0 0.0
    %1595 = vmatprep.subr.mxu0 0.0
    %1596 = vmatpush1.msra.mxu0 0.0
    %1597 = vmatprep.mubr.f32.mxu0 %v1525
    %1598 = vmatmul.mubr.f32.gmra.mrb[0].mxu0 %v1486
    %v1599 = vpop.f32.mrb[0].mxu0
    %v1600 = vadd.f32 0.0, %v1599
    %v1601 = vpop.f32.mrb[0].mxu0
    %1602 = vmatprep.mubr.f32.mxu0 %v1527
    %1603 = vmatmul.mubr.f32.gmra.mrb[0].mxu0 %v1490
    %v1604 = vpop.f32.mrb[0].mxu0
    %v1605 = vadd.f32 0.0, %v1604
    %v1606 = vpop.f32.mrb[0].mxu0
    %1607 = vmatprep.mubr.f32.mxu0 %v1529
    %1608 = vmatmul.mubr.f32.gmra.mrb[0].mxu0 %v1496
    %v1609 = vpop.f32.mrb[0].mxu0
    %v1610 = vadd.f32 0.0, %v1609
    %v1611 = vpop.f32.mrb[0].mxu0
    %1612 = vmatprep.mubr.f32.mxu0 %v1531
    %1613 = vmatmul.mubr.f32.gmra.mrb[0].mxu0 %v1501
    %v1614 = vpop.f32.mrb[0].mxu0
    %v1615 = vadd.f32 0.0, %v1614
    %v1616 = vpop.f32.mrb[0].mxu0
    %1617 = vdwg.mxu0
    %v1618 = vadd.f32 %v1466, %v1600
    %v1619 = vadd.f32 %v1471, %v1605
    %v1620 = vadd.f32 %v1476, %v1610
    %v1621 = vadd.f32 %v1481, %v1615
    %v1622 = vld [vmem:[%s11] sm:$0x7]
    %v1623 = vld [vmem:[%s9] sm:$0xff]
    %v1625 = vsel %vm682, %v1622, 0
    %1627 = vmatprep.subr.mxu0 0.0
    %1628 = vmatpush1.msra.mxu0 %v1623
    %1629 = vmatprep.subr.mxu0 0.0
    %1630 = vmatpush1.msra.mxu0 0.0
    %1631 = vmatprep.subr.mxu0 0.0
    %1632 = vmatpush1.msra.mxu0 0.0
    %1633 = vmatprep.subr.mxu0 0.0
    %1634 = vmatpush1.msra.mxu0 0.0
    %1635 = vmatprep.subr.mxu0 0.0
    %1636 = vmatpush1.msra.mxu0 0.0
    %1637 = vmatprep.subr.mxu0 0.0
    %1638 = vmatpush1.msra.mxu0 0.0
    %1639 = vmatprep.subr.mxu0 0.0
    %1640 = vmatpush1.msra.mxu0 0.0
    %1641 = vmatprep.subr.mxu0 0.0
    %1642 = vmatpush1.msra.mxu0 0.0
    %1643 = vmatprep.subr.mxu0 0.0
    %1644 = vmatpush1.msra.mxu0 0.0
    %1645 = vmatprep.subr.mxu0 0.0
    %1646 = vmatpush1.msra.mxu0 0.0
    %1647 = vmatprep.subr.mxu0 0.0
    %1648 = vmatpush1.msra.mxu0 0.0
    %1649 = vmatprep.subr.mxu0 0.0
    %1650 = vmatpush1.msra.mxu0 0.0
    %1651 = vmatprep.subr.mxu0 0.0
    %1652 = vmatpush1.msra.mxu0 0.0
    %1653 = vmatprep.subr.mxu0 0.0
    %1654 = vmatpush1.msra.mxu0 0.0
    %1655 = vmatprep.subr.mxu0 0.0
    %1656 = vmatpush1.msra.mxu0 0.0
    %1657 = vmatprep.subr.mxu0 0.0
    %1658 = vmatpush1.msra.mxu0 0.0
    %1659 = vmatprep.subr.mxu0 0.0
    %1660 = vmatpush1.msra.mxu0 0.0
    %1661 = vmatprep.subr.mxu0 0.0
    %1662 = vmatpush1.msra.mxu0 0.0
    %1663 = vmatprep.subr.mxu0 0.0
    %1664 = vmatpush1.msra.mxu0 0.0
    %1665 = vmatprep.subr.mxu0 0.0
    %1666 = vmatpush1.msra.mxu0 0.0
    %1667 = vmatprep.subr.mxu0 0.0
    %1668 = vmatpush1.msra.mxu0 0.0
    %1669 = vmatprep.subr.mxu0 0.0
    %1670 = vmatpush1.msra.mxu0 0.0
    %1671 = vmatprep.subr.mxu0 0.0
    %1672 = vmatpush1.msra.mxu0 0.0
    %1673 = vmatprep.subr.mxu0 0.0
    %1674 = vmatpush1.msra.mxu0 0.0
    %1675 = vmatprep.subr.mxu0 0.0
    %1676 = vmatpush1.msra.mxu0 0.0
    %1677 = vmatprep.subr.mxu0 0.0
    %1678 = vmatpush1.msra.mxu0 0.0
    %1679 = vmatprep.subr.mxu0 0.0
    %1680 = vmatpush1.msra.mxu0 0.0
    %1681 = vmatprep.subr.mxu0 0.0
    %1682 = vmatpush1.msra.mxu0 0.0
    %1683 = vmatprep.subr.mxu0 0.0
    %1684 = vmatpush1.msra.mxu0 0.0
    %1685 = vmatprep.subr.mxu0 0.0
    %1686 = vmatpush1.msra.mxu0 0.0
    %1687 = vmatprep.subr.mxu0 0.0
    %1688 = vmatpush1.msra.mxu0 0.0
    %1689 = vmatprep.subr.mxu0 0.0
    %1690 = vmatpush1.msra.mxu0 0.0
    %1691 = vmatprep.mubr.f32.mxu0 0.0
    %1692 = vmatmul.mubr.f32.gmra.mrb[0].mxu0 %v1625
    %v1693 = vpop.f32.mrb[0].mxu0
    %v1694 = vadd.f32 0.0, %v1693
    %v1695 = vpop.f32.mrb[0].mxu0
    %1696 = vdwg.mxu0
    %v1697 = vlaneseq
    %v1698 = vshrl.u32 %v1697, 7
    %v1699 = vsub.s32 0, %v1698
    %v1700 = vrot.slane %v1694, %v1699
    %v1701 = vadd.f32 %v1618, %v1700
    %v1702 = vadd.f32 %v1619, %v1700
    %v1703 = vadd.f32 %v1620, %v1700
    %v1704 = vadd.f32 %v1621, %v1700
    %v1705 = vadd.f32 %v1701, %v1702
    %v1706 = vadd.f32 %v1705, %v1703
    %v1707 = vadd.f32 %v1706, %v1704
    %v1708 = vrot.slane %v1707, 4
    %v1709 = vadd.f32 %v1707, %v1708
    %v1710 = vrot.slane %v1709, 2
    %v1711 = vadd.f32 %v1709, %v1710
    %v1712 = vrot.slane %v1711, 1
    %v1713 = vadd.f32 %v1711, %v1712
    %v1714 = vld [vmem:[%s8] sm:$0xff]
    %v1715 = vld [vmem:[%s8 + $0x8] sm:$0xff]
    %v1716 = vld [vmem:[%s8 + $0x10] sm:$0xff]
    %v1717 = vld [vmem:[%s8 + $0x18] sm:$0xff]
    %v1718 = vld [vmem:[%s8 + $0x20] sm:$0xff]
    %v1719 = vld [vmem:[%s8 + $0x28] sm:$0xff]
    %v1720 = vld [vmem:[%s8 + $0x30] sm:$0xff]
    %v1721 = vld [vmem:[%s8 + $0x38] sm:$0xff]
    %v1722 = vld [vmem:[%s8 + $0x40] sm:$0xff]
    %v1723 = vld [vmem:[%s8 + $0x48] sm:$0xff]
    %v1724 = vld [vmem:[%s8 + $0x50] sm:$0xff]
    %v1725 = vld [vmem:[%s8 + $0x58] sm:$0xff]
    %v1726 = vld [vmem:[%s8 + $0x60] sm:$0xff]
    %v1727 = vld [vmem:[%s8 + $0x68] sm:$0xff]
    %v1728 = vld [vmem:[%s8 + $0x70] sm:$0xff]
    %v1729 = vld [vmem:[%s8 + $0x78] sm:$0xff]
    %1730 = vmatprep.subr.mxu0 0.0
    %1731 = vmatpush1.msra.mxu0 %v1714
    %1732 = vmatprep.subr.mxu0 0.0
    %1733 = vmatpush1.msra.mxu0 %v1715
    %1734 = vmatprep.subr.mxu0 0.0
    %1735 = vmatpush1.msra.mxu0 %v1716
    %1736 = vmatprep.subr.mxu0 0.0
    %1737 = vmatpush1.msra.mxu0 %v1717
    %1738 = vmatprep.subr.mxu0 0.0
    %1739 = vmatpush1.msra.mxu0 %v1718
    %1740 = vmatprep.subr.mxu0 0.0
    %1741 = vmatpush1.msra.mxu0 %v1719
    %1742 = vmatprep.subr.mxu0 0.0
    %1743 = vmatpush1.msra.mxu0 %v1720
    %1744 = vmatprep.subr.mxu0 0.0
    %1745 = vmatpush1.msra.mxu0 %v1721
    %1746 = vmatprep.subr.mxu0 0.0
    %1747 = vmatpush1.msra.mxu0 %v1722
    %1748 = vmatprep.subr.mxu0 0.0
    %1749 = vmatpush1.msra.mxu0 %v1723
    %1750 = vmatprep.subr.mxu0 0.0
    %1751 = vmatpush1.msra.mxu0 %v1724
    %1752 = vmatprep.subr.mxu0 0.0
    %1753 = vmatpush1.msra.mxu0 %v1725
    %1754 = vmatprep.subr.mxu0 0.0
    %1755 = vmatpush1.msra.mxu0 %v1726
    %1756 = vmatprep.subr.mxu0 0.0
    %1757 = vmatpush1.msra.mxu0 %v1727
    %1758 = vmatprep.subr.mxu0 0.0
    %1759 = vmatpush1.msra.mxu0 %v1728
    %1760 = vmatprep.subr.mxu0 0.0
    %1761 = vmatpush1.msra.mxu0 %v1729
    %1762 = vmatprep.subr.mxu0 0.0
    %1763 = vmatpush1.msra.mxu0 0.0
    %1764 = vmatprep.subr.mxu0 0.0
    %1765 = vmatpush1.msra.mxu0 0.0
    %1766 = vmatprep.subr.mxu0 0.0
    %1767 = vmatpush1.msra.mxu0 0.0
    %1768 = vmatprep.subr.mxu0 0.0
    %1769 = vmatpush1.msra.mxu0 0.0
    %1770 = vmatprep.subr.mxu0 0.0
    %1771 = vmatpush1.msra.mxu0 0.0
    %1772 = vmatprep.subr.mxu0 0.0
    %1773 = vmatpush1.msra.mxu0 0.0
    %1774 = vmatprep.subr.mxu0 0.0
    %1775 = vmatpush1.msra.mxu0 0.0
    %1776 = vmatprep.subr.mxu0 0.0
    %1777 = vmatpush1.msra.mxu0 0.0
    %1778 = vmatprep.subr.mxu0 0.0
    %1779 = vmatpush1.msra.mxu0 0.0
    %1780 = vmatprep.subr.mxu0 0.0
    %1781 = vmatpush1.msra.mxu0 0.0
    %1782 = vmatprep.subr.mxu0 0.0
    %1783 = vmatpush1.msra.mxu0 0.0
    %1784 = vmatprep.subr.mxu0 0.0
    %1785 = vmatpush1.msra.mxu0 0.0
    %1786 = vmatprep.subr.mxu0 0.0
    %1787 = vmatpush1.msra.mxu0 0.0
    %1788 = vmatprep.subr.mxu0 0.0
    %1789 = vmatpush1.msra.mxu0 0.0
    %1790 = vmatprep.subr.mxu0 0.0
    %1791 = vmatpush1.msra.mxu0 0.0
    %1792 = vmatprep.subr.mxu0 0.0
    %1793 = vmatpush1.msra.mxu0 0.0
    %1794 = vmatprep.mubr.f32.mxu0 0.0
    %1795 = vmatmul.mubr.f32.gmra.mrb[0].mxu0 %v1713
    %v1796 = vpop.f32.mrb[0].mxu0
    %v1797 = vadd.f32 0.0, %v1796
    %v1798 = vpop.f32.mrb[0].mxu0
    %1799 = vdwg.mxu0
    %v1800 = vmul.f32 %v1701, %v1701
    %v1801 = vmul.f32 %v1702, %v1702
    %v1802 = vmul.f32 %v1703, %v1703
    %v1803 = vmul.f32 %v1704, %v1704
    %v1804 = vadd.f32 %v1800, %v1801
    %v1805 = vadd.f32 %v1804, %v1802
    %v1806 = vadd.f32 %v1805, %v1803
    %v1807 = vrot.slane %v1806, 4
    %v1808 = vadd.f32 %v1806, %v1807
    %v1809 = vrot.slane %v1808, 2
    %v1810 = vadd.f32 %v1808, %v1809
    %v1811 = vrot.slane %v1810, 1
    %v1812 = vadd.f32 %v1810, %v1811
    %1813 = vmatprep.subr.mxu0 0.0
    %1814 = vmatpush1.msra.mxu0 %v1714
    %1815 = vmatprep.subr.mxu0 0.0
    %1816 = vmatpush1.msra.mxu0 %v1715
    %1817 = vmatprep.subr.mxu0 0.0
    %1818 = vmatpush1.msra.mxu0 %v1716
    %1819 = vmatprep.subr.mxu0 0.0
    %1820 = vmatpush1.msra.mxu0 %v1717
    %1821 = vmatprep.subr.mxu0 0.0
    %1822 = vmatpush1.msra.mxu0 %v1718
    %1823 = vmatprep.subr.mxu0 0.0
    %1824 = vmatpush1.msra.mxu0 %v1719
    %1825 = vmatprep.subr.mxu0 0.0
    %1826 = vmatpush1.msra.mxu0 %v1720
    %1827 = vmatprep.subr.mxu0 0.0
    %1828 = vmatpush1.msra.mxu0 %v1721
    %1829 = vmatprep.subr.mxu0 0.0
    %1830 = vmatpush1.msra.mxu0 %v1722
    %1831 = vmatprep.subr.mxu0 0.0
    %1832 = vmatpush1.msra.mxu0 %v1723
    %1833 = vmatprep.subr.mxu0 0.0
    %1834 = vmatpush1.msra.mxu0 %v1724
    %1835 = vmatprep.subr.mxu0 0.0
    %1836 = vmatpush1.msra.mxu0 %v1725
    %1837 = vmatprep.subr.mxu0 0.0
    %1838 = vmatpush1.msra.mxu0 %v1726
    %1839 = vmatprep.subr.mxu0 0.0
    %1840 = vmatpush1.msra.mxu0 %v1727
    %1841 = vmatprep.subr.mxu0 0.0
    %1842 = vmatpush1.msra.mxu0 %v1728
    %1843 = vmatprep.subr.mxu0 0.0
    %1844 = vmatpush1.msra.mxu0 %v1729
    %1845 = vmatprep.subr.mxu0 0.0
    %1846 = vmatpush1.msra.mxu0 0.0
    %1847 = vmatprep.subr.mxu0 0.0
    %1848 = vmatpush1.msra.mxu0 0.0
    %1849 = vmatprep.subr.mxu0 0.0
    %1850 = vmatpush1.msra.mxu0 0.0
    %1851 = vmatprep.subr.mxu0 0.0
    %1852 = vmatpush1.msra.mxu0 0.0
    %1853 = vmatprep.subr.mxu0 0.0
    %1854 = vmatpush1.msra.mxu0 0.0
    %1855 = vmatprep.subr.mxu0 0.0
    %1856 = vmatpush1.msra.mxu0 0.0
    %1857 = vmatprep.subr.mxu0 0.0
    %1858 = vmatpush1.msra.mxu0 0.0
    %1859 = vmatprep.subr.mxu0 0.0
    %1860 = vmatpush1.msra.mxu0 0.0
    %1861 = vmatprep.subr.mxu0 0.0
    %1862 = vmatpush1.msra.mxu0 0.0
    %1863 = vmatprep.subr.mxu0 0.0
    %1864 = vmatpush1.msra.mxu0 0.0
    %1865 = vmatprep.subr.mxu0 0.0
    %1866 = vmatpush1.msra.mxu0 0.0
    %1867 = vmatprep.subr.mxu0 0.0
    %1868 = vmatpush1.msra.mxu0 0.0
    %1869 = vmatprep.subr.mxu0 0.0
    %1870 = vmatpush1.msra.mxu0 0.0
    %1871 = vmatprep.subr.mxu0 0.0
    %1872 = vmatpush1.msra.mxu0 0.0
    %1873 = vmatprep.subr.mxu0 0.0
    %1874 = vmatpush1.msra.mxu0 0.0
    %1875 = vmatprep.subr.mxu0 0.0
    %1876 = vmatpush1.msra.mxu0 0.0
    %1877 = vmatprep.mubr.f32.mxu0 0.0
    %1878 = vmatmul.mubr.f32.gmra.mrb[0].mxu0 %v1812
    %v1879 = vpop.f32.mrb[0].mxu0
    %v1880 = vadd.f32 0.0, %v1879
    %v1881 = vpop.f32.mrb[0].mxu0
    %1882 = vdwg.mxu0
    %v1883 = vmul.f32 %v1797, 0.001953125
    %v1884 = vmul.f32 %v1880, 0.001953125
    %v1885 = vmul.f32 %v1883, %v1883
    %v1886 = vsub.f32 %v1884, %v1885
    %v1887 = vmax.f32 %v1886, 0.0
    %v1888 = vadd.f32 %v1887, 1e-05
    %v1889 = vrsqrt.pop %v1888
    %v1891 = vrot.slane %v1889, 7
    %v1893 = vmul.f32 %v1622, %v1891
    %v1895 = vrot.slane %v1893, 1
    %v1897 = vmul.f32 %v1883, %v1895
    %v1899 = vrot.slane %v1897, 6
    %v1901 = vsub.f32 %v1622, %v1899
    %v1902 = vsel %vm682, %v1895, 0
    %1904 = vmatprep.subr.mxu0 0.0
    %1905 = vmatpush1.msra.mxu0 %v1623
    %1906 = vmatprep.subr.mxu0 0.0
    %1907 = vmatpush1.msra.mxu0 0.0
    %1908 = vmatprep.subr.mxu0 0.0
    %1909 = vmatpush1.msra.mxu0 0.0
    %1910 = vmatprep.subr.mxu0 0.0
    %1911 = vmatpush1.msra.mxu0 0.0
    %1912 = vmatprep.subr.mxu0 0.0
    %1913 = vmatpush1.msra.mxu0 0.0
    %1914 = vmatprep.subr.mxu0 0.0
    %1915 = vmatpush1.msra.mxu0 0.0
    %1916 = vmatprep.subr.mxu0 0.0
    %1917 = vmatpush1.msra.mxu0 0.0
    %1918 = vmatprep.subr.mxu0 0.0
    %1919 = vmatpush1.msra.mxu0 0.0
    %1920 = vmatprep.subr.mxu0 0.0
    %1921 = vmatpush1.msra.mxu0 0.0
    %1922 = vmatprep.subr.mxu0 0.0
    %1923 = vmatpush1.msra.mxu0 0.0
    %1924 = vmatprep.subr.mxu0 0.0
    %1925 = vmatpush1.msra.mxu0 0.0
    %1926 = vmatprep.subr.mxu0 0.0
    %1927 = vmatpush1.msra.mxu0 0.0
    %1928 = vmatprep.subr.mxu0 0.0
    %1929 = vmatpush1.msra.mxu0 0.0
    %1930 = vmatprep.subr.mxu0 0.0
    %1931 = vmatpush1.msra.mxu0 0.0
    %1932 = vmatprep.subr.mxu0 0.0
    %1933 = vmatpush1.msra.mxu0 0.0
    %1934 = vmatprep.subr.mxu0 0.0
    %1935 = vmatpush1.msra.mxu0 0.0
    %1936 = vmatprep.subr.mxu0 0.0
    %1937 = vmatpush1.msra.mxu0 0.0
    %1938 = vmatprep.subr.mxu0 0.0
    %1939 = vmatpush1.msra.mxu0 0.0
    %1940 = vmatprep.subr.mxu0 0.0
    %1941 = vmatpush1.msra.mxu0 0.0
    %1942 = vmatprep.subr.mxu0 0.0
    %1943 = vmatpush1.msra.mxu0 0.0
    %1944 = vmatprep.subr.mxu0 0.0
    %1945 = vmatpush1.msra.mxu0 0.0
    %1946 = vmatprep.subr.mxu0 0.0
    %1947 = vmatpush1.msra.mxu0 0.0
    %1948 = vmatprep.subr.mxu0 0.0
    %1949 = vmatpush1.msra.mxu0 0.0
    %1950 = vmatprep.subr.mxu0 0.0
    %1951 = vmatpush1.msra.mxu0 0.0
    %1952 = vmatprep.subr.mxu0 0.0
    %1953 = vmatpush1.msra.mxu0 0.0
    %1954 = vmatprep.subr.mxu0 0.0
    %1955 = vmatpush1.msra.mxu0 0.0
    %1956 = vmatprep.subr.mxu0 0.0
    %1957 = vmatpush1.msra.mxu0 0.0
    %1958 = vmatprep.subr.mxu0 0.0
    %1959 = vmatpush1.msra.mxu0 0.0
    %1960 = vmatprep.subr.mxu0 0.0
    %1961 = vmatpush1.msra.mxu0 0.0
    %1962 = vmatprep.subr.mxu0 0.0
    %1963 = vmatpush1.msra.mxu0 0.0
    %1964 = vmatprep.subr.mxu0 0.0
    %1965 = vmatpush1.msra.mxu0 0.0
    %1966 = vmatprep.subr.mxu0 0.0
    %1967 = vmatpush1.msra.mxu0 0.0
    %1968 = vmatprep.mubr.f32.mxu0 0.0
    %1969 = vmatmul.mubr.f32.gmra.mrb[0].mxu0 %v1902
    %v1970 = vpop.f32.mrb[0].mxu0
    %v1971 = vadd.f32 0.0, %v1970
    %v1972 = vpop.f32.mrb[0].mxu0
    %1973 = vdwg.mxu0
    %v1974 = vlaneseq
    %v1975 = vshrl.u32 %v1974, 7
    %v1976 = vsub.s32 0, %v1975
    %v1977 = vrot.slane %v1971, %v1976
    %v1978 = vmul.f32 %v1701, %v1977
    %v1979 = vmul.f32 %v1702, %v1977
    %v1980 = vmul.f32 %v1703, %v1977
    %v1981 = vmul.f32 %v1704, %v1977
    %v1983 = vrot.slane %v1901, 2
    %v1984 = vsel %vm682, %v1983, 0
    %1986 = vmatprep.subr.mxu0 0.0
    %1987 = vmatpush1.msra.mxu0 %v1623
    %1988 = vmatprep.subr.mxu0 0.0
    %1989 = vmatpush1.msra.mxu0 0.0
    %1990 = vmatprep.subr.mxu0 0.0
    %1991 = vmatpush1.msra.mxu0 0.0
    %1992 = vmatprep.subr.mxu0 0.0
    %1993 = vmatpush1.msra.mxu0 0.0
    %1994 = vmatprep.subr.mxu0 0.0
    %1995 = vmatpush1.msra.mxu0 0.0
    %1996 = vmatprep.subr.mxu0 0.0
    %1997 = vmatpush1.msra.mxu0 0.0
    %1998 = vmatprep.subr.mxu0 0.0
    %1999 = vmatpush1.msra.mxu0 0.0
    %2000 = vmatprep.subr.mxu0 0.0
    %2001 = vmatpush1.msra.mxu0 0.0
    %2002 = vmatprep.subr.mxu0 0.0
    %2003 = vmatpush1.msra.mxu0 0.0
    %2004 = vmatprep.subr.mxu0 0.0
    %2005 = vmatpush1.msra.mxu0 0.0
    %2006 = vmatprep.subr.mxu0 0.0
    %2007 = vmatpush1.msra.mxu0 0.0
    %2008 = vmatprep.subr.mxu0 0.0
    %2009 = vmatpush1.msra.mxu0 0.0
    %2010 = vmatprep.subr.mxu0 0.0
    %2011 = vmatpush1.msra.mxu0 0.0
    %2012 = vmatprep.subr.mxu0 0.0
    %2013 = vmatpush1.msra.mxu0 0.0
    %2014 = vmatprep.subr.mxu0 0.0
    %2015 = vmatpush1.msra.mxu0 0.0
    %2016 = vmatprep.subr.mxu0 0.0
    %2017 = vmatpush1.msra.mxu0 0.0
    %2018 = vmatprep.subr.mxu0 0.0
    %2019 = vmatpush1.msra.mxu0 0.0
    %2020 = vmatprep.subr.mxu0 0.0
    %2021 = vmatpush1.msra.mxu0 0.0
    %2022 = vmatprep.subr.mxu0 0.0
    %2023 = vmatpush1.msra.mxu0 0.0
    %2024 = vmatprep.subr.mxu0 0.0
    %2025 = vmatpush1.msra.mxu0 0.0
    %2026 = vmatprep.subr.mxu0 0.0
    %2027 = vmatpush1.msra.mxu0 0.0
    %2028 = vmatprep.subr.mxu0 0.0
    %2029 = vmatpush1.msra.mxu0 0.0
    %2030 = vmatprep.subr.mxu0 0.0
    %2031 = vmatpush1.msra.mxu0 0.0
    %2032 = vmatprep.subr.mxu0 0.0
    %2033 = vmatpush1.msra.mxu0 0.0
    %2034 = vmatprep.subr.mxu0 0.0
    %2035 = vmatpush1.msra.mxu0 0.0
    %2036 = vmatprep.subr.mxu0 0.0
    %2037 = vmatpush1.msra.mxu0 0.0
    %2038 = vmatprep.subr.mxu0 0.0
    %2039 = vmatpush1.msra.mxu0 0.0
    %2040 = vmatprep.subr.mxu0 0.0
    %2041 = vmatpush1.msra.mxu0 0.0
    %2042 = vmatprep.subr.mxu0 0.0
    %2043 = vmatpush1.msra.mxu0 0.0
    %2044 = vmatprep.subr.mxu0 0.0
    %2045 = vmatpush1.msra.mxu0 0.0
    %2046 = vmatprep.subr.mxu0 0.0
    %2047 = vmatpush1.msra.mxu0 0.0
    %2048 = vmatprep.subr.mxu0 0.0
    %2049 = vmatpush1.msra.mxu0 0.0
    %2050 = vmatprep.mubr.f32.mxu0 0.0
    %2051 = vmatmul.mubr.f32.gmra.mrb[0].mxu0 %v1984
    %v2052 = vpop.f32.mrb[0].mxu0
    %v2053 = vadd.f32 0.0, %v2052
    %v2054 = vpop.f32.mrb[0].mxu0
    %2055 = vdwg.mxu0
    %v2056 = vlaneseq
    %v2057 = vshrl.u32 %v2056, 7
    %v2058 = vsub.s32 0, %v2057
    %v2059 = vrot.slane %v2053, %v2058
    %v2060 = vadd.f32 %v1978, %v2059
    %v2061 = vadd.f32 %v1979, %v2059
    %v2062 = vadd.f32 %v1980, %v2059
    %v2063 = vadd.f32 %v1981, %v2059
    %v2064 = vmax.f32 %v2060, 0.0
    %v2065 = vmax.f32 %v2061, 0.0
    %v2066 = vmax.f32 %v2062, 0.0
    %v2067 = vmax.f32 %v2063, 0.0
    %2068 = vst [vmem:[#allocation2] sm:$0xff] %v2064
    %2069 = vst [vmem:[#allocation2 + $0x8] sm:$0xff] %v2065
    %2070 = vst [vmem:[#allocation2 + $0x10] sm:$0xff] %v2066
    %2071 = vst [vmem:[#allocation2 + $0x18] sm:$0xff] %v2067
    // Predicated region
    $region50: #{tpu_custom_call.1} parent=1 // pred_check
      _
    $region51: #{tpu_custom_call.1} parent=1 // pred_check_branch
      %2073 = sbr.rel (0) target = $region53
    $region52: #{tpu_custom_call.1} parent=1 // pred_region
      %s2075 = ssub.s32 512, 512
      %2076 = vsyncadd [#allocation3], %s2075
      %s2077 = sshll.u32 [#allocation2], 4
      %s2078 = int_to_ptr.vmem [resolvable:$true] %s2077
      %2083 = dma.vmem_to_hbm [thread:$0]  %s2078, 512, %s12, [#allocation3], 128, 128, 8
    $region53: #{tpu_custom_call.1} parent=1 // pred_fallthru
      _
    // Predicated region
    $region54: #{tpu_custom_call.1} parent=1 // pred_check
      _
    $region55: #{tpu_custom_call.1} parent=1 // pred_check_branch
      %2085 = sbr.rel (0) target = $region57
    $region56: #{tpu_custom_call.1} parent=1 // pred_region
      %2086 = dma.done [#allocation3], 512
    $region57: #{tpu_custom_call.1} parent=1 // pred_fallthru
      _
    %2087 = vsyncpa [#allocation3], 1

</llo_original>
